<compile_context>
chip_gen: v6e
topology: v6e:2x2x1
jax: 0.10.0
libtpu: 0.0.40
codegen_flags: <defaults>
</compile_context>

<pallas_src>
import numpy as np
import jax
import jax.numpy as jnp
from jax.experimental import pallas as pl
from jax.experimental.pallas import tpu as pltpu


def _round_up(v, m):
    return ((v + m - 1) // m) * m


def _choose_problems_per_step(B, N):
    """K problems per grid step: K | B, K*N <= 256 rows, prefer >=2 grid steps."""
    cands = [k for k in range(1, min(8, B) + 1) if B % k == 0 and k * N <= 256]
    if not cands:
        return 1
    multi_step = [k for k in cands if B // k >= 2]
    return max(multi_step) if multi_step else max(cands)


def _encoder_kernel(adj_ref, x_ref, sel_ref,
                    w1_ref, b1_ref, w2_ref, b2_ref,
                    w3_ref, b3_ref, w4_ref, b4_ref,
                    wfc_ref, bfc_ref,
                    out_ref):
    f32 = jnp.float32
    bf16 = jnp.bfloat16
    adj = adj_ref[...]                                   # (K*N, K*N) block-diag 0/1 bf16

    # ----- hop 1: block-diag adj @ x, then MLP[0] (Linear+ReLU, Linear+ReLU) -----
    h = jnp.dot(adj, x_ref[...], preferred_element_type=f32)                      # (K*N, Dp)
    h = jnp.maximum(
        jnp.dot(h.astype(bf16), w1_ref[...], preferred_element_type=f32) + b1_ref[...], 0.0)
    h = jnp.maximum(
        jnp.dot(h.astype(bf16), w2_ref[...], preferred_element_type=f32) + b2_ref[...], 0.0)

    # ----- hop 2: block-diag adj @ h, then MLP[1] -----
    h = jnp.dot(adj, h.astype(bf16), preferred_element_type=f32)
    h = jnp.maximum(
        jnp.dot(h.astype(bf16), w3_ref[...], preferred_element_type=f32) + b3_ref[...], 0.0)
    h = jnp.maximum(
        jnp.dot(h.astype(bf16), w4_ref[...], preferred_element_type=f32) + b4_ref[...], 0.0)

    # ----- scatter_add pooling: block-diag one-hot sel (K*Gp, K*N) @ h (K*N, Hp) -----
    pooled = jnp.dot(sel_ref[...], h.astype(bf16), preferred_element_type=f32)    # (K*Gp, Hp)

    # ----- final fc (lane-dense (K*Gp, Hp) store).  Padded graph rows only hold
    #       bfc and are sliced off in the wrapper. -----
    out_ref[...] = (
        jnp.dot(pooled.astype(bf16), wfc_ref[...], preferred_element_type=f32) + bfc_ref[...])


def _encoder_forward_impl(adj, x, idx, params, num_graphs):
    """Batched fused kernel: K problems per grid step, weights resident in VMEM."""
    B, N, D_in = x.shape
    H = params["w1"].shape[1]
    Dp = _round_up(D_in, 128)          # lane-dense input features
    Hp = _round_up(H, 128)             # lane-dense hidden / output features
    Gp = _round_up(num_graphs, 16)     # sublane-friendly graph rows (bf16 tile = 16)
    K = _choose_problems_per_step(B, N)
    Bg = B // K                        # grid steps
    KN, KGp = K * N, K * Gp
    bf16 = jnp.bfloat16

    adj_b = adj.astype(bf16)                                           # 0/1 -> exact in bf16
    x_p = jnp.pad(x.astype(jnp.float32),
                  ((0, 0), (0, 0), (0, Dp - D_in))).astype(bf16)
    # One-hot pooling matrix per problem (0/1 -> exact in bf16).
    sel = (idx[:, None, :] == jnp.arange(Gp, dtype=jnp.int32)[None, :, None]).astype(bf16)

    # Block-diagonal packing: K per-problem blocks per grid step so each hop /
    # pooling is ONE full-width MXU matmul (off-diagonal blocks are exact zeros).
    eye = jnp.eye(K, dtype=bf16)
    adj_g = adj_b.reshape(Bg, K, N, N)
    adj_bd = (adj_g[:, :, None, :, :] * eye[None, :, :, None, None])   # (Bg,K,K,N,N)
    adj_bd = adj_bd.transpose(0, 1, 3, 2, 4).reshape(Bg, KN, KN)
    sel_g = sel.reshape(Bg, K, Gp, N)
    sel_bd = (sel_g[:, :, None, :, :] * eye[None, :, :, None, None])   # (Bg,K,K,Gp,N)
    sel_bd = sel_bd.transpose(0, 1, 3, 2, 4).reshape(Bg, KGp, KN)
    x_g = x_p.reshape(Bg, KN, Dp)

    def pad_w(w, rin, cout):
        return jnp.pad(w, ((0, rin - w.shape[0]), (0, cout - w.shape[1]))).astype(bf16)

    def pad_b(b, cout):
        return jnp.pad(b, ((0, 0), (0, cout - b.shape[1]))).astype(jnp.float32)

    w1 = pad_w(params["w1"], Dp, Hp); b1 = pad_b(params["b1"], Hp)
    w2 = pad_w(params["w2"], Hp, Hp); b2 = pad_b(params["b2"], Hp)
    w3 = pad_w(params["w3"], Hp, Hp); b3 = pad_b(params["b3"], Hp)
    w4 = pad_w(params["w4"], Hp, Hp); b4 = pad_b(params["b4"], Hp)
    wfc = pad_w(params["wfc"], Hp, Hp); bfc = pad_b(params["bfc"], Hp)

    def batched(shape):    # per-step operand: new block each grid step
        return pl.BlockSpec((None,) + shape, lambda g: (g, 0, 0))

    def resident(shape):   # weights/biases: constant block index -> stay in VMEM
        return pl.BlockSpec(shape, lambda g: (0, 0))

    in_specs = [
        batched((KN, KN)),       # block-diag adj
        batched((KN, Dp)),       # stacked x (padded)
        batched((KGp, KN)),      # block-diag one-hot pooling
        resident((Dp, Hp)), resident((1, Hp)),   # w1, b1
        resident((Hp, Hp)), resident((1, Hp)),   # w2, b2
        resident((Hp, Hp)), resident((1, Hp)),   # w3, b3
        resident((Hp, Hp)), resident((1, Hp)),   # w4, b4
        resident((Hp, Hp)), resident((1, Hp)),   # wfc, bfc
    ]

    flops_per_step = 2 * (KN * KN * Dp            # hop 1
                          + KN * Dp * Hp          # w1
                          + 3 * KN * Hp * Hp      # w2, w3, w4
                          + KN * KN * Hp          # hop 2
                          + KGp * KN * Hp         # pooling
                          + KGp * Hp * Hp)        # fc
    bytes_per_step = 2 * (KN * KN + KN * Dp + KGp * KN) + 4 * KGp * Hp
    weight_bytes = 2 * (Dp * Hp + 4 * Hp * Hp) + 4 * 5 * Hp
    cost = pl.CostEstimate(flops=Bg * flops_per_step, transcendentals=0,
                           bytes_accessed=Bg * bytes_per_step + weight_bytes)

    out = pl.pallas_call(
        _encoder_kernel,
        out_shape=jax.ShapeDtypeStruct((Bg, KGp, Hp), jnp.float32),
        grid=(Bg,),
        in_specs=in_specs,
        out_specs=pl.BlockSpec((None, KGp, Hp), lambda g: (g, 0, 0)),
        compiler_params=pltpu.CompilerParams(
            dimension_semantics=("parallel",)),   # >=2 steps kept when B allows -> 2 TCs on v7x
        cost_estimate=cost,
        # TODO(synk): for large N, tile adj rows / the reduction axis with a
        # pl.when-managed f32 VMEM accumulator instead of a fully resident
        # (K*N, K*N) tile (mind v7x's 64 MiB VMEM).
    )(adj_bd, x_g, sel_bd, w1, b1, w2, b2, w3, b3, w4, b4, wfc, bfc)

    # Unpack block-diag layout and drop padded graph rows / hidden lanes.
    out = out.reshape(B, Gp, Hp)
    return out[:, :num_graphs, :H]


encoder_forward = jax.jit(_encoder_forward_impl, static_argnames=("num_graphs",))


if __name__ == "__main__":
    # B independent problems, N nodes each, D_in input feats, hidden H,
    # n_layers=2 (mlps[0], mlps[1]), G graphs per problem.
    B, N, D_in, H, G = 8, 32, 16, 32, 4

    key = jax.random.PRNGKey(0)
    ks = jax.random.split(key, 8)

    adj = jax.random.bernoulli(ks[0], 0.3, (B, N, N)).astype(jnp.float32)
    adj = jnp.maximum(adj, jnp.swapaxes(adj, -1, -2))              # symmetric adjacency
    x = jax.random.normal(ks[1], (B, N, D_in), jnp.float32)
    idx = jnp.tile(jnp.repeat(jnp.arange(G, dtype=jnp.int32), N // G)[None, :], (B, 1))

    def lin(k, din, dout):
        kw, kb = jax.random.split(k)
        w = jax.random.normal(kw, (din, dout), jnp.float32) * (1.0 / np.sqrt(din))
        b = jax.random.normal(kb, (1, dout), jnp.float32) * 0.01
        return w, b

    w1, b1 = lin(ks[2], D_in, H)   # mlps[0] first Linear
    w2, b2 = lin(ks[3], H, H)      # mlps[0] second Linear
    w3, b3 = lin(ks[4], H, H)      # mlps[1] first Linear
    w4, b4 = lin(ks[5], H, H)      # mlps[1] second Linear
    wfc, bfc = lin(ks[6], H, H)    # self.fc
    params = dict(w1=w1, b1=b1, w2=w2, b2=b2, w3=w3, b3=b3,
                  w4=w4, b4=b4, wfc=wfc, bfc=bfc)

    out = encoder_forward(adj, x, idx, params, num_graphs=G)
    out = jax.block_until_ready(out)
    out_np = np.asarray(out)

    # --- Reference 1: precision-matched (same bf16 casts, f32 accumulation). ---
    def ref_bf16_matched():
        bf16, f32 = jnp.bfloat16, jnp.float32
        w1b, w2b, w3b, w4b, wfcb = (a.astype(bf16) for a in (w1, w2, w3, w4, wfc))

        def one(adj_b, x_b, idx_b):
            a = adj_b.astype(bf16)
            h = jnp.dot(a, x_b.astype(bf16), preferred_element_type=f32)
            h = jnp.maximum(jnp.dot(h.astype(bf16), w1b, preferred_element_type=f32) + b1, 0.0)
            h = jnp.maximum(jnp.dot(h.astype(bf16), w2b, preferred_element_type=f32) + b2, 0.0)
            h = jnp.dot(a, h.astype(bf16), preferred_element_type=f32)
            h = jnp.maximum(jnp.dot(h.astype(bf16), w3b, preferred_element_type=f32) + b3, 0.0)
            h = jnp.maximum(jnp.dot(h.astype(bf16), w4b, preferred_element_type=f32) + b4, 0.0)
            sel_b = (idx_b[None, :] == jnp.arange(G, dtype=jnp.int32)[:, None]).astype(bf16)
            pooled = jnp.dot(sel_b, h.astype(bf16), preferred_element_type=f32)
            return jnp.dot(pooled.astype(bf16), wfcb, preferred_element_type=f32) + bfc

        return jax.vmap(one)(adj, x, idx)

    # --- Reference 2: full-f32 mirror of the PyTorch forward. ---
    def ref_f32():
        def one(adj_b, x_b, idx_b):
            h = adj_b @ x_b
            h = jnp.maximum(h @ w1 + b1, 0.0)
            h = jnp.maximum(h @ w2 + b2, 0.0)
            h = adj_b @ h
            h = jnp.maximum(h @ w3 + b3, 0.0)
            h = jnp.maximum(h @ w4 + b4, 0.0)
            sel_b = (idx_b[None, :] == jnp.arange(G, dtype=jnp.int32)[:, None]).astype(jnp.float32)
            pooled = sel_b @ h                                  # scatter_add_
            return pooled @ wfc + bfc
        return jax.vmap(one)(adj, x, idx)

    # Tight check: kernel == precision-matched reference (same computation graph).
    np.testing.assert_allclose(out_np, np.asarray(ref_bf16_matched()),
                               rtol=2e-3, atol=2e-3)

    # Robust check vs full-f32 forward: bound the drift by a fraction of the
    # output dynamic range (per-element rtol is meaningless on near-zero outputs
    # produced by cancellation of ~1e2-magnitude intermediates under bf16).
    ref32 = np.asarray(ref_f32())
    scale = float(np.max(np.abs(ref32)))
    max_err = float(np.max(np.abs(out_np - ref32)))
    assert max_err <= 0.03 * scale, (
        f"bf16 drift vs f32 reference too large: max_err={max_err:.4f}, "
        f"allowed={0.03 * scale:.4f} (scale={scale:.2f})")

    print("KERNEL_OK")
</pallas_src>

<mosaic_0001>
module attributes {stable_mosaic.version = 11 : i64} {
  func.func @_encoder_kernel(%arg0: i32, %arg1: memref<1x128x128xbf16, #tpu.memory_space<vmem>>, %arg2: memref<1x128x128xbf16, #tpu.memory_space<vmem>>, %arg3: memref<1x64x128xbf16, #tpu.memory_space<vmem>>, %arg4: memref<128x128xbf16, #tpu.memory_space<vmem>>, %arg5: memref<1x128xf32, #tpu.memory_space<vmem>>, %arg6: memref<128x128xbf16, #tpu.memory_space<vmem>>, %arg7: memref<1x128xf32, #tpu.memory_space<vmem>>, %arg8: memref<128x128xbf16, #tpu.memory_space<vmem>>, %arg9: memref<1x128xf32, #tpu.memory_space<vmem>>, %arg10: memref<128x128xbf16, #tpu.memory_space<vmem>>, %arg11: memref<1x128xf32, #tpu.memory_space<vmem>>, %arg12: memref<128x128xbf16, #tpu.memory_space<vmem>>, %arg13: memref<1x128xf32, #tpu.memory_space<vmem>>, %arg14: memref<1x64x128xf32, #tpu.memory_space<vmem>>) attributes {dimension_semantics = [#tpu.dimension_semantics<parallel>], iteration_bounds = array<i64: 2>, scalar_prefetch = 0 : i64, scratch_operands = 0 : i64, tpu.core_type = #tpu.core_type<tc>, window_params = [{transform_indices = @transform_0, window_bounds = array<i64: 1, 128, 128>}, {transform_indices = @transform_1, window_bounds = array<i64: 1, 128, 128>}, {transform_indices = @transform_2, window_bounds = array<i64: 1, 64, 128>}, {pipeline_mode = #tpu.pipeline_mode<synchronous>, transform_indices = @transform_3, window_bounds = array<i64: 128, 128>}, {pipeline_mode = #tpu.pipeline_mode<synchronous>, transform_indices = @transform_4, window_bounds = array<i64: 1, 128>}, {pipeline_mode = #tpu.pipeline_mode<synchronous>, transform_indices = @transform_5, window_bounds = array<i64: 128, 128>}, {pipeline_mode = #tpu.pipeline_mode<synchronous>, transform_indices = @transform_6, window_bounds = array<i64: 1, 128>}, {pipeline_mode = #tpu.pipeline_mode<synchronous>, transform_indices = @transform_7, window_bounds = array<i64: 128, 128>}, {pipeline_mode = #tpu.pipeline_mode<synchronous>, transform_indices = @transform_8, window_bounds = array<i64: 1, 128>}, {pipeline_mode = #tpu.pipeline_mode<synchronous>, transform_indices = @transform_9, window_bounds = array<i64: 128, 128>}, {pipeline_mode = #tpu.pipeline_mode<synchronous>, transform_indices = @transform_10, window_bounds = array<i64: 1, 128>}, {pipeline_mode = #tpu.pipeline_mode<synchronous>, transform_indices = @transform_11, window_bounds = array<i64: 128, 128>}, {pipeline_mode = #tpu.pipeline_mode<synchronous>, transform_indices = @transform_12, window_bounds = array<i64: 1, 128>}, {transform_indices = @transform_13, window_bounds = array<i64: 1, 64, 128>}]} {
    %c0 = arith.constant 0 : index
    %c0_0 = arith.constant 0 : index
    %c0_1 = arith.constant 0 : index
    %0 = vector.load %arg1[%c0, %c0_0, %c0_1] : memref<1x128x128xbf16, #tpu.memory_space<vmem>>, vector<1x128x128xbf16>
    %1 = vector.shape_cast %0 : vector<1x128x128xbf16> to vector<128x128xbf16>
    %c0_2 = arith.constant 0 : index
    %c0_3 = arith.constant 0 : index
    %c0_4 = arith.constant 0 : index
    %2 = vector.load %arg2[%c0_2, %c0_3, %c0_4] : memref<1x128x128xbf16, #tpu.memory_space<vmem>>, vector<1x128x128xbf16>
    %3 = vector.shape_cast %2 : vector<1x128x128xbf16> to vector<128x128xbf16>
    %cst = arith.constant dense<0.000000e+00> : vector<128x128xf32>
    %4 = tpu.matmul %1, %3, %cst {dimension_numbers = #tpu.dot_dimension_numbers<[1], [0], [0], [1], [0, 0, 1, 1], [], []>} : vector<128x128xbf16>, vector<128x128xbf16>, vector<128x128xf32> -> vector<128x128xf32>
    %5 = arith.truncf %4 : vector<128x128xf32> to vector<128x128xbf16>
    %c0_5 = arith.constant 0 : index
    %c0_6 = arith.constant 0 : index
    %6 = vector.load %arg4[%c0_5, %c0_6] : memref<128x128xbf16, #tpu.memory_space<vmem>>, vector<128x128xbf16>
    %cst_7 = arith.constant dense<0.000000e+00> : vector<128x128xf32>
    %7 = tpu.matmul %5, %6, %cst_7 {dimension_numbers = #tpu.dot_dimension_numbers<[1], [0], [0], [1], [0, 0, 1, 1], [], []>} : vector<128x128xbf16>, vector<128x128xbf16>, vector<128x128xf32> -> vector<128x128xf32>
    %c0_8 = arith.constant 0 : index
    %c0_9 = arith.constant 0 : index
    %8 = vector.load %arg5[%c0_8, %c0_9] : memref<1x128xf32, #tpu.memory_space<vmem>>, vector<1x128xf32>
    %9 = vector.broadcast %8 : vector<1x128xf32> to vector<128x128xf32>
    %10 = arith.addf %7, %9 : vector<128x128xf32>
    %cst_10 = arith.constant 0.000000e+00 : f32
    %11 = vector.broadcast %cst_10 : f32 to vector<128x128xf32>
    %12 = arith.maximumf %10, %11 : vector<128x128xf32>
    %13 = arith.truncf %12 : vector<128x128xf32> to vector<128x128xbf16>
    %c0_11 = arith.constant 0 : index
    %c0_12 = arith.constant 0 : index
    %14 = vector.load %arg6[%c0_11, %c0_12] : memref<128x128xbf16, #tpu.memory_space<vmem>>, vector<128x128xbf16>
    %cst_13 = arith.constant dense<0.000000e+00> : vector<128x128xf32>
    %15 = tpu.matmul %13, %14, %cst_13 {dimension_numbers = #tpu.dot_dimension_numbers<[1], [0], [0], [1], [0, 0, 1, 1], [], []>} : vector<128x128xbf16>, vector<128x128xbf16>, vector<128x128xf32> -> vector<128x128xf32>
    %c0_14 = arith.constant 0 : index
    %c0_15 = arith.constant 0 : index
    %16 = vector.load %arg7[%c0_14, %c0_15] : memref<1x128xf32, #tpu.memory_space<vmem>>, vector<1x128xf32>
    %17 = vector.broadcast %16 : vector<1x128xf32> to vector<128x128xf32>
    %18 = arith.addf %15, %17 : vector<128x128xf32>
    %cst_16 = arith.constant 0.000000e+00 : f32
    %19 = vector.broadcast %cst_16 : f32 to vector<128x128xf32>
    %20 = arith.maximumf %18, %19 : vector<128x128xf32>
    %21 = arith.truncf %20 : vector<128x128xf32> to vector<128x128xbf16>
    %cst_17 = arith.constant dense<0.000000e+00> : vector<128x128xf32>
    %22 = tpu.matmul %1, %21, %cst_17 {dimension_numbers = #tpu.dot_dimension_numbers<[1], [0], [0], [1], [0, 0, 1, 1], [], []>} : vector<128x128xbf16>, vector<128x128xbf16>, vector<128x128xf32> -> vector<128x128xf32>
    %23 = arith.truncf %22 : vector<128x128xf32> to vector<128x128xbf16>
    %c0_18 = arith.constant 0 : index
    %c0_19 = arith.constant 0 : index
    %24 = vector.load %arg8[%c0_18, %c0_19] : memref<128x128xbf16, #tpu.memory_space<vmem>>, vector<128x128xbf16>
    %cst_20 = arith.constant dense<0.000000e+00> : vector<128x128xf32>
    %25 = tpu.matmul %23, %24, %cst_20 {dimension_numbers = #tpu.dot_dimension_numbers<[1], [0], [0], [1], [0, 0, 1, 1], [], []>} : vector<128x128xbf16>, vector<128x128xbf16>, vector<128x128xf32> -> vector<128x128xf32>
    %c0_21 = arith.constant 0 : index
    %c0_22 = arith.constant 0 : index
    %26 = vector.load %arg9[%c0_21, %c0_22] : memref<1x128xf32, #tpu.memory_space<vmem>>, vector<1x128xf32>
    %27 = vector.broadcast %26 : vector<1x128xf32> to vector<128x128xf32>
    %28 = arith.addf %25, %27 : vector<128x128xf32>
    %cst_23 = arith.constant 0.000000e+00 : f32
    %29 = vector.broadcast %cst_23 : f32 to vector<128x128xf32>
    %30 = arith.maximumf %28, %29 : vector<128x128xf32>
    %31 = arith.truncf %30 : vector<128x128xf32> to vector<128x128xbf16>
    %c0_24 = arith.constant 0 : index
    %c0_25 = arith.constant 0 : index
    %32 = vector.load %arg10[%c0_24, %c0_25] : memref<128x128xbf16, #tpu.memory_space<vmem>>, vector<128x128xbf16>
    %cst_26 = arith.constant dense<0.000000e+00> : vector<128x128xf32>
    %33 = tpu.matmul %31, %32, %cst_26 {dimension_numbers = #tpu.dot_dimension_numbers<[1], [0], [0], [1], [0, 0, 1, 1], [], []>} : vector<128x128xbf16>, vector<128x128xbf16>, vector<128x128xf32> -> vector<128x128xf32>
    %c0_27 = arith.constant 0 : index
    %c0_28 = arith.constant 0 : index
    %34 = vector.load %arg11[%c0_27, %c0_28] : memref<1x128xf32, #tpu.memory_space<vmem>>, vector<1x128xf32>
    %35 = vector.broadcast %34 : vector<1x128xf32> to vector<128x128xf32>
    %36 = arith.addf %33, %35 : vector<128x128xf32>
    %cst_29 = arith.constant 0.000000e+00 : f32
    %37 = vector.broadcast %cst_29 : f32 to vector<128x128xf32>
    %38 = arith.maximumf %36, %37 : vector<128x128xf32>
    %c0_30 = arith.constant 0 : index
    %c0_31 = arith.constant 0 : index
    %c0_32 = arith.constant 0 : index
    %39 = vector.load %arg3[%c0_30, %c0_31, %c0_32] : memref<1x64x128xbf16, #tpu.memory_space<vmem>>, vector<1x64x128xbf16>
    %40 = vector.shape_cast %39 : vector<1x64x128xbf16> to vector<64x128xbf16>
    %41 = arith.truncf %38 : vector<128x128xf32> to vector<128x128xbf16>
    %cst_33 = arith.constant dense<0.000000e+00> : vector<64x128xf32>
    %42 = tpu.matmul %40, %41, %cst_33 {dimension_numbers = #tpu.dot_dimension_numbers<[1], [0], [0], [1], [0, 0, 1, 1], [], []>} : vector<64x128xbf16>, vector<128x128xbf16>, vector<64x128xf32> -> vector<64x128xf32>
    %43 = arith.truncf %42 : vector<64x128xf32> to vector<64x128xbf16>
    %c0_34 = arith.constant 0 : index
    %c0_35 = arith.constant 0 : index
    %44 = vector.load %arg12[%c0_34, %c0_35] : memref<128x128xbf16, #tpu.memory_space<vmem>>, vector<128x128xbf16>
    %cst_36 = arith.constant dense<0.000000e+00> : vector<64x128xf32>
    %45 = tpu.matmul %43, %44, %cst_36 {dimension_numbers = #tpu.dot_dimension_numbers<[1], [0], [0], [1], [0, 0, 1, 1], [], []>} : vector<64x128xbf16>, vector<128x128xbf16>, vector<64x128xf32> -> vector<64x128xf32>
    %c0_37 = arith.constant 0 : index
    %c0_38 = arith.constant 0 : index
    %46 = vector.load %arg13[%c0_37, %c0_38] : memref<1x128xf32, #tpu.memory_space<vmem>>, vector<1x128xf32>
    %47 = vector.broadcast %46 : vector<1x128xf32> to vector<64x128xf32>
    %48 = arith.addf %45, %47 : vector<64x128xf32>
    %c0_39 = arith.constant 0 : index
    %c0_40 = arith.constant 0 : index
    %c0_41 = arith.constant 0 : index
    %49 = vector.load %arg14[%c0_39, %c0_40, %c0_41] : memref<1x64x128xf32, #tpu.memory_space<vmem>>, vector<1x64x128xf32>
    %50 = vector.shape_cast %49 : vector<1x64x128xf32> to vector<64x128xf32>
    %51 = vector.shape_cast %48 : vector<64x128xf32> to vector<1x64x128xf32>
    tpu.vector_store %arg14[%c0_39, %c0_40, %c0_41], %51 {strides = array<i32>} : memref<1x64x128xf32, #tpu.memory_space<vmem>>, vector<1x64x128xf32>,
    return
  }
  func.func @transform_0(%arg0: i32) -> (i32, i32, i32) {
    %c0_i32 = arith.constant 0 : i32
    %c0_i32_0 = arith.constant 0 : i32
    %c0_i32_1 = arith.constant 0 : i32
    return %arg0, %c0_i32, %c0_i32_0 : i32, i32, i32
  }
  func.func @transform_1(%arg0: i32) -> (i32, i32, i32) {
    %c0_i32 = arith.constant 0 : i32
    %c0_i32_0 = arith.constant 0 : i32
    %c0_i32_1 = arith.constant 0 : i32
    return %arg0, %c0_i32, %c0_i32_0 : i32, i32, i32
  }
  func.func @transform_2(%arg0: i32) -> (i32, i32, i32) {
    %c0_i32 = arith.constant 0 : i32
    %c0_i32_0 = arith.constant 0 : i32
    %c0_i32_1 = arith.constant 0 : i32
    return %arg0, %c0_i32, %c0_i32_0 : i32, i32, i32
  }
  func.func @transform_3(%arg0: i32) -> (i32, i32) {
    %c0_i32 = arith.constant 0 : i32
    %c0_i32_0 = arith.constant 0 : i32
    %c0_i32_1 = arith.constant 0 : i32
    return %c0_i32, %c0_i32_0 : i32, i32
  }
  func.func @transform_4(%arg0: i32) -> (i32, i32) {
    %c0_i32 = arith.constant 0 : i32
    %c0_i32_0 = arith.constant 0 : i32
    %c0_i32_1 = arith.constant 0 : i32
    return %c0_i32, %c0_i32_0 : i32, i32
  }
  func.func @transform_5(%arg0: i32) -> (i32, i32) {
    %c0_i32 = arith.constant 0 : i32
    %c0_i32_0 = arith.constant 0 : i32
    %c0_i32_1 = arith.constant 0 : i32
    return %c0_i32, %c0_i32_0 : i32, i32
  }
  func.func @transform_6(%arg0: i32) -> (i32, i32) {
    %c0_i32 = arith.constant 0 : i32
    %c0_i32_0 = arith.constant 0 : i32
    %c0_i32_1 = arith.constant 0 : i32
    return %c0_i32, %c0_i32_0 : i32, i32
  }
  func.func @transform_7(%arg0: i32) -> (i32, i32) {
    %c0_i32 = arith.constant 0 : i32
    %c0_i32_0 = arith.constant 0 : i32
    %c0_i32_1 = arith.constant 0 : i32
    return %c0_i32, %c0_i32_0 : i32, i32
  }
  func.func @transform_8(%arg0: i32) -> (i32, i32) {
    %c0_i32 = arith.constant 0 : i32
    %c0_i32_0 = arith.constant 0 : i32
    %c0_i32_1 = arith.constant 0 : i32
    return %c0_i32, %c0_i32_0 : i32, i32
  }
  func.func @transform_9(%arg0: i32) -> (i32, i32) {
    %c0_i32 = arith.constant 0 : i32
    %c0_i32_0 = arith.constant 0 : i32
    %c0_i32_1 = arith.constant 0 : i32
    return %c0_i32, %c0_i32_0 : i32, i32
  }
  func.func @transform_10(%arg0: i32) -> (i32, i32) {
    %c0_i32 = arith.constant 0 : i32
    %c0_i32_0 = arith.constant 0 : i32
    %c0_i32_1 = arith.constant 0 : i32
    return %c0_i32, %c0_i32_0 : i32, i32
  }
  func.func @transform_11(%arg0: i32) -> (i32, i32) {
    %c0_i32 = arith.constant 0 : i32
    %c0_i32_0 = arith.constant 0 : i32
    %c0_i32_1 = arith.constant 0 : i32
    return %c0_i32, %c0_i32_0 : i32, i32
  }
  func.func @transform_12(%arg0: i32) -> (i32, i32) {
    %c0_i32 = arith.constant 0 : i32
    %c0_i32_0 = arith.constant 0 : i32
    %c0_i32_1 = arith.constant 0 : i32
    return %c0_i32, %c0_i32_0 : i32, i32
  }
  func.func @transform_13(%arg0: i32) -> (i32, i32, i32) {
    %c0_i32 = arith.constant 0 : i32
    %c0_i32_0 = arith.constant 0 : i32
    %c0_i32_1 = arith.constant 0 : i32
    return %arg0, %c0_i32, %c0_i32_0 : i32, i32, i32
  }
}

</mosaic_0001>

<llo_original>
// kernel: _encoder_forward_impl.1
$region0: #{_encoder_forward_impl.1}
  #allocation0 [shape = 'u32[]', space=smem, size = 0x4, offset = 0x4, fixed_abs, tag = 'smem constant byte address 0x4 - core index']
  #allocation1 [shape = 'u32[144,128]{1,0:T(1,128)}', space=vmem, size = 0x12000, scoped, tag = 'internal scratch']
  %s0 = inlined_call_operand.vmem [shape: bf16[2,128,128], index: 0, kind: input, shape index: {}]
  %s1 = inlined_call_operand.vmem [shape: bf16[2,128,128], index: 1, kind: input, shape index: {}]
  %s2 = inlined_call_operand.vmem [shape: bf16[2,64,128], index: 2, kind: input, shape index: {}]
  %s3 = inlined_call_operand.vmem [shape: bf16[128,128], index: 3, kind: input, shape index: {}]
  %s4 = inlined_call_operand.vmem [shape: f32[1,128], index: 4, kind: input, shape index: {}]
  %s5 = inlined_call_operand.vmem [shape: bf16[128,128], index: 5, kind: input, shape index: {}]
  %s6 = inlined_call_operand.vmem [shape: f32[1,128], index: 6, kind: input, shape index: {}]
  %s7 = inlined_call_operand.vmem [shape: bf16[128,128], index: 7, kind: input, shape index: {}]
  %s8 = inlined_call_operand.vmem [shape: f32[1,128], index: 8, kind: input, shape index: {}]
  %s9 = inlined_call_operand.vmem [shape: bf16[128,128], index: 9, kind: input, shape index: {}]
  %s10 = inlined_call_operand.vmem [shape: f32[1,128], index: 10, kind: input, shape index: {}]
  %s11 = inlined_call_operand.vmem [shape: bf16[128,128], index: 11, kind: input, shape index: {}]
  %s12 = inlined_call_operand.vmem [shape: f32[1,128], index: 12, kind: input, shape index: {}]
  %s13 = inlined_call_operand.vmem [shape: f32[2,64,128], index: 13, kind: output, shape index: {}]
  %s14 = sld [smem:[#allocation0]]
  $region85: #{_encoder_forward_impl.1} parent=0
    _
  %s16 = ssub.s32 1, %s14
  %s17 = scalar_select 0, %s16, %s14
  loop: start=0, step=1, limit=4
  $region2: #{_encoder_forward_impl.1} parent=0 // loop_pre_header
    _
  $region3: #{_encoder_forward_impl.1} parent=0 // loop_header
    %s19 = sphi 0, %s23
    %p20 = scmp.ge.s32.totalorder %s19, 4
    %s29 = sphi 0, %s31
    %s32 = sphi 0, %s29
    %s33 = sphi 0, %s32
    %s49 = sphi 0, %s33
    %s55 = sphi 0, %s57
    %s58 = sphi 0, %s55
    %s59 = sphi 0, %s58
    %s75 = sphi 0, %s59
    %s81 = sphi 0, %s83
    %s84 = sphi 0, %s81
    %s85 = sphi 0, %s84
    %s101 = sphi 0, %s85
    %s105 = sphi 0, %s105
    %s107 = sphi 0, %s105
    %s108 = sphi 0, %s107
    %s122 = sphi 0, %s108
    %s126 = sphi 0, %s126
    %s128 = sphi 0, %s126
    %s129 = sphi 0, %s128
    %s143 = sphi 0, %s129
    %s147 = sphi 0, %s147
    %s149 = sphi 0, %s147
    %s150 = sphi 0, %s149
    %s164 = sphi 0, %s150
    %s168 = sphi 0, %s168
    %s170 = sphi 0, %s168
    %s171 = sphi 0, %s170
    %s185 = sphi 0, %s171
    %s189 = sphi 0, %s189
    %s191 = sphi 0, %s189
    %s192 = sphi 0, %s191
    %s206 = sphi 0, %s192
    %s210 = sphi 0, %s210
    %s212 = sphi 0, %s210
    %s213 = sphi 0, %s212
    %s227 = sphi 0, %s213
    %s231 = sphi 0, %s231
    %s233 = sphi 0, %s231
    %s234 = sphi 0, %s233
    %s248 = sphi 0, %s234
    %s252 = sphi 0, %s252
    %s254 = sphi 0, %s252
    %s255 = sphi 0, %s254
    %s269 = sphi 0, %s255
    %s273 = sphi 0, %s273
    %s275 = sphi 0, %s273
    %s276 = sphi 0, %s275
    %s290 = sphi 0, %s276
    %s294 = sphi 0, %s294
    %s296 = sphi 0, %s294
    %s297 = sphi 0, %s296
    %s311 = sphi 0, %s297
    %s317 = sphi 0, %s319
    %s320 = sphi 0, %s317
    %s321 = sphi 0, %s320
    %s337 = sphi 0, %s321
  $region4: #{_encoder_forward_impl.1} parent=0 // loop_header_branch
    %22 = sbr.rel (%p20) target = $region8
  $region5: #{_encoder_forward_impl.1} parent=0 // loop_body
    %s24 = ssub.s32 %s19, 1
    %s25 = ssub.s32 %s19, 2
    %s26 = sadd.s32 %s19, 1
    %s27 = ssub.s32 %s19, %s26
    %p28 = scmp.eq.s32.totalorder %s27, 0
    %s30 = sadd.s32 %s29, 1
    %s31 = scalar_select %p28, %s29, %s30
    %p34 = pneg %p28
    %p35 = scmp.eq.s32.totalorder %s19, 1
    %p36 = por %p34, %p35
    %p37 = scmp.ne.s32.totalorder %s29, %s32
    %p38 = scmp.eq.s32.totalorder %s19, 0
    %p39 = por %p37, %p38
    %p40 = scmp.ne.s32.totalorder %s29, %s32
    %p41 = scmp.eq.s32.totalorder %s24, 1
    %p42 = por %p40, %p41
    %p43 = scmp.ne.s32.totalorder %s32, %s33
    %p44 = scmp.eq.s32.totalorder %s24, 0
    %p45 = por %p43, %p44
    %p46 = scmp.ne.s32.totalorder %s32, %s33
    %p47 = scmp.eq.s32.totalorder %s25, 1
    %p48 = por %p46, %p47
    %p50 = scmp.ne.s32.totalorder %s33, %s49
    %p51 = scmp.eq.s32.totalorder %s25, 0
    %p52 = por %p50, %p51
    %s53 = ssub.s32 %s19, %s26
    %p54 = scmp.eq.s32.totalorder %s53, 0
    %s56 = sadd.s32 %s55, 1
    %s57 = scalar_select %p54, %s55, %s56
    %p60 = pneg %p54
    %p61 = scmp.eq.s32.totalorder %s19, 1
    %p62 = por %p60, %p61
    %p63 = scmp.ne.s32.totalorder %s55, %s58
    %p64 = scmp.eq.s32.totalorder %s19, 0
    %p65 = por %p63, %p64
    %p66 = scmp.ne.s32.totalorder %s55, %s58
    %p67 = scmp.eq.s32.totalorder %s24, 1
    %p68 = por %p66, %p67
    %p69 = scmp.ne.s32.totalorder %s58, %s59
    %p70 = scmp.eq.s32.totalorder %s24, 0
    %p71 = por %p69, %p70
    %p72 = scmp.ne.s32.totalorder %s58, %s59
    %p73 = scmp.eq.s32.totalorder %s25, 1
    %p74 = por %p72, %p73
    %p76 = scmp.ne.s32.totalorder %s59, %s75
    %p77 = scmp.eq.s32.totalorder %s25, 0
    %p78 = por %p76, %p77
    %s79 = ssub.s32 %s19, %s26
    %p80 = scmp.eq.s32.totalorder %s79, 0
    %s82 = sadd.s32 %s81, 1
    %s83 = scalar_select %p80, %s81, %s82
    %p86 = pneg %p80
    %p87 = scmp.eq.s32.totalorder %s19, 1
    %p88 = por %p86, %p87
    %p89 = scmp.ne.s32.totalorder %s81, %s84
    %p90 = scmp.eq.s32.totalorder %s19, 0
    %p91 = por %p89, %p90
    %p92 = scmp.ne.s32.totalorder %s81, %s84
    %p93 = scmp.eq.s32.totalorder %s24, 1
    %p94 = por %p92, %p93
    %p95 = scmp.ne.s32.totalorder %s84, %s85
    %p96 = scmp.eq.s32.totalorder %s24, 0
    %p97 = por %p95, %p96
    %p98 = scmp.ne.s32.totalorder %s84, %s85
    %p99 = scmp.eq.s32.totalorder %s25, 1
    %p100 = por %p98, %p99
    %p102 = scmp.ne.s32.totalorder %s85, %s101
    %p103 = scmp.eq.s32.totalorder %s25, 0
    %p104 = por %p102, %p103
    %s106 = sadd.s32 %s105, 1
    %p109 = scmp.eq.s32.totalorder %s19, 1
    %p110 = scmp.ne.s32.totalorder %s105, %s107
    %p111 = scmp.eq.s32.totalorder %s19, 0
    %p112 = por %p110, %p111
    %p113 = scmp.ne.s32.totalorder %s105, %s107
    %p114 = scmp.eq.s32.totalorder %s24, 1
    %p115 = por %p113, %p114
    %p116 = scmp.ne.s32.totalorder %s107, %s108
    %p117 = scmp.eq.s32.totalorder %s24, 0
    %p118 = por %p116, %p117
    %p119 = scmp.ne.s32.totalorder %s107, %s108
    %p120 = scmp.eq.s32.totalorder %s25, 1
    %p121 = por %p119, %p120
    %p123 = scmp.ne.s32.totalorder %s108, %s122
    %p124 = scmp.eq.s32.totalorder %s25, 0
    %p125 = por %p123, %p124
    %s127 = sadd.s32 %s126, 1
    %p130 = scmp.eq.s32.totalorder %s19, 1
    %p131 = scmp.ne.s32.totalorder %s126, %s128
    %p132 = scmp.eq.s32.totalorder %s19, 0
    %p133 = por %p131, %p132
    %p134 = scmp.ne.s32.totalorder %s126, %s128
    %p135 = scmp.eq.s32.totalorder %s24, 1
    %p136 = por %p134, %p135
    %p137 = scmp.ne.s32.totalorder %s128, %s129
    %p138 = scmp.eq.s32.totalorder %s24, 0
    %p139 = por %p137, %p138
    %p140 = scmp.ne.s32.totalorder %s128, %s129
    %p141 = scmp.eq.s32.totalorder %s25, 1
    %p142 = por %p140, %p141
    %p144 = scmp.ne.s32.totalorder %s129, %s143
    %p145 = scmp.eq.s32.totalorder %s25, 0
    %p146 = por %p144, %p145
    %s148 = sadd.s32 %s147, 1
    %p151 = scmp.eq.s32.totalorder %s19, 1
    %p152 = scmp.ne.s32.totalorder %s147, %s149
    %p153 = scmp.eq.s32.totalorder %s19, 0
    %p154 = por %p152, %p153
    %p155 = scmp.ne.s32.totalorder %s147, %s149
    %p156 = scmp.eq.s32.totalorder %s24, 1
    %p157 = por %p155, %p156
    %p158 = scmp.ne.s32.totalorder %s149, %s150
    %p159 = scmp.eq.s32.totalorder %s24, 0
    %p160 = por %p158, %p159
    %p161 = scmp.ne.s32.totalorder %s149, %s150
    %p162 = scmp.eq.s32.totalorder %s25, 1
    %p163 = por %p161, %p162
    %p165 = scmp.ne.s32.totalorder %s150, %s164
    %p166 = scmp.eq.s32.totalorder %s25, 0
    %p167 = por %p165, %p166
    %s169 = sadd.s32 %s168, 1
    %p172 = scmp.eq.s32.totalorder %s19, 1
    %p173 = scmp.ne.s32.totalorder %s168, %s170
    %p174 = scmp.eq.s32.totalorder %s19, 0
    %p175 = por %p173, %p174
    %p176 = scmp.ne.s32.totalorder %s168, %s170
    %p177 = scmp.eq.s32.totalorder %s24, 1
    %p178 = por %p176, %p177
    %p179 = scmp.ne.s32.totalorder %s170, %s171
    %p180 = scmp.eq.s32.totalorder %s24, 0
    %p181 = por %p179, %p180
    %p182 = scmp.ne.s32.totalorder %s170, %s171
    %p183 = scmp.eq.s32.totalorder %s25, 1
    %p184 = por %p182, %p183
    %p186 = scmp.ne.s32.totalorder %s171, %s185
    %p187 = scmp.eq.s32.totalorder %s25, 0
    %p188 = por %p186, %p187
    %s190 = sadd.s32 %s189, 1
    %p193 = scmp.eq.s32.totalorder %s19, 1
    %p194 = scmp.ne.s32.totalorder %s189, %s191
    %p195 = scmp.eq.s32.totalorder %s19, 0
    %p196 = por %p194, %p195
    %p197 = scmp.ne.s32.totalorder %s189, %s191
    %p198 = scmp.eq.s32.totalorder %s24, 1
    %p199 = por %p197, %p198
    %p200 = scmp.ne.s32.totalorder %s191, %s192
    %p201 = scmp.eq.s32.totalorder %s24, 0
    %p202 = por %p200, %p201
    %p203 = scmp.ne.s32.totalorder %s191, %s192
    %p204 = scmp.eq.s32.totalorder %s25, 1
    %p205 = por %p203, %p204
    %p207 = scmp.ne.s32.totalorder %s192, %s206
    %p208 = scmp.eq.s32.totalorder %s25, 0
    %p209 = por %p207, %p208
    %s211 = sadd.s32 %s210, 1
    %p214 = scmp.eq.s32.totalorder %s19, 1
    %p215 = scmp.ne.s32.totalorder %s210, %s212
    %p216 = scmp.eq.s32.totalorder %s19, 0
    %p217 = por %p215, %p216
    %p218 = scmp.ne.s32.totalorder %s210, %s212
    %p219 = scmp.eq.s32.totalorder %s24, 1
    %p220 = por %p218, %p219
    %p221 = scmp.ne.s32.totalorder %s212, %s213
    %p222 = scmp.eq.s32.totalorder %s24, 0
    %p223 = por %p221, %p222
    %p224 = scmp.ne.s32.totalorder %s212, %s213
    %p225 = scmp.eq.s32.totalorder %s25, 1
    %p226 = por %p224, %p225
    %p228 = scmp.ne.s32.totalorder %s213, %s227
    %p229 = scmp.eq.s32.totalorder %s25, 0
    %p230 = por %p228, %p229
    %s232 = sadd.s32 %s231, 1
    %p235 = scmp.eq.s32.totalorder %s19, 1
    %p236 = scmp.ne.s32.totalorder %s231, %s233
    %p237 = scmp.eq.s32.totalorder %s19, 0
    %p238 = por %p236, %p237
    %p239 = scmp.ne.s32.totalorder %s231, %s233
    %p240 = scmp.eq.s32.totalorder %s24, 1
    %p241 = por %p239, %p240
    %p242 = scmp.ne.s32.totalorder %s233, %s234
    %p243 = scmp.eq.s32.totalorder %s24, 0
    %p244 = por %p242, %p243
    %p245 = scmp.ne.s32.totalorder %s233, %s234
    %p246 = scmp.eq.s32.totalorder %s25, 1
    %p247 = por %p245, %p246
    %p249 = scmp.ne.s32.totalorder %s234, %s248
    %p250 = scmp.eq.s32.totalorder %s25, 0
    %p251 = por %p249, %p250
    %s253 = sadd.s32 %s252, 1
    %p256 = scmp.eq.s32.totalorder %s19, 1
    %p257 = scmp.ne.s32.totalorder %s252, %s254
    %p258 = scmp.eq.s32.totalorder %s19, 0
    %p259 = por %p257, %p258
    %p260 = scmp.ne.s32.totalorder %s252, %s254
    %p261 = scmp.eq.s32.totalorder %s24, 1
    %p262 = por %p260, %p261
    %p263 = scmp.ne.s32.totalorder %s254, %s255
    %p264 = scmp.eq.s32.totalorder %s24, 0
    %p265 = por %p263, %p264
    %p266 = scmp.ne.s32.totalorder %s254, %s255
    %p267 = scmp.eq.s32.totalorder %s25, 1
    %p268 = por %p266, %p267
    %p270 = scmp.ne.s32.totalorder %s255, %s269
    %p271 = scmp.eq.s32.totalorder %s25, 0
    %p272 = por %p270, %p271
    %s274 = sadd.s32 %s273, 1
    %p277 = scmp.eq.s32.totalorder %s19, 1
    %p278 = scmp.ne.s32.totalorder %s273, %s275
    %p279 = scmp.eq.s32.totalorder %s19, 0
    %p280 = por %p278, %p279
    %p281 = scmp.ne.s32.totalorder %s273, %s275
    %p282 = scmp.eq.s32.totalorder %s24, 1
    %p283 = por %p281, %p282
    %p284 = scmp.ne.s32.totalorder %s275, %s276
    %p285 = scmp.eq.s32.totalorder %s24, 0
    %p286 = por %p284, %p285
    %p287 = scmp.ne.s32.totalorder %s275, %s276
    %p288 = scmp.eq.s32.totalorder %s25, 1
    %p289 = por %p287, %p288
    %p291 = scmp.ne.s32.totalorder %s276, %s290
    %p292 = scmp.eq.s32.totalorder %s25, 0
    %p293 = por %p291, %p292
    %s295 = sadd.s32 %s294, 1
    %p298 = scmp.eq.s32.totalorder %s19, 1
    %p299 = scmp.ne.s32.totalorder %s294, %s296
    %p300 = scmp.eq.s32.totalorder %s19, 0
    %p301 = por %p299, %p300
    %p302 = scmp.ne.s32.totalorder %s294, %s296
    %p303 = scmp.eq.s32.totalorder %s24, 1
    %p304 = por %p302, %p303
    %p305 = scmp.ne.s32.totalorder %s296, %s297
    %p306 = scmp.eq.s32.totalorder %s24, 0
    %p307 = por %p305, %p306
    %p308 = scmp.ne.s32.totalorder %s296, %s297
    %p309 = scmp.eq.s32.totalorder %s25, 1
    %p310 = por %p308, %p309
    %p312 = scmp.ne.s32.totalorder %s297, %s311
    %p313 = scmp.eq.s32.totalorder %s25, 0
    %p314 = por %p312, %p313
    %s315 = ssub.s32 %s19, %s26
    %p316 = scmp.eq.s32.totalorder %s315, 0
    %s318 = sadd.s32 %s317, 1
    %s319 = scalar_select %p316, %s317, %s318
    %p322 = pneg %p316
    %p323 = scmp.eq.s32.totalorder %s19, 1
    %p324 = por %p322, %p323
    %p325 = scmp.ne.s32.totalorder %s317, %s320
    %p326 = scmp.eq.s32.totalorder %s19, 0
    %p327 = por %p325, %p326
    %p328 = scmp.ne.s32.totalorder %s317, %s320
    %p329 = scmp.eq.s32.totalorder %s24, 1
    %p330 = por %p328, %p329
    %p331 = scmp.ne.s32.totalorder %s320, %s321
    %p332 = scmp.eq.s32.totalorder %s24, 0
    %p333 = por %p331, %p332
    %p334 = scmp.ne.s32.totalorder %s320, %s321
    %p335 = scmp.eq.s32.totalorder %s25, 1
    %p336 = por %p334, %p335
    %p338 = scmp.ne.s32.totalorder %s321, %s337
    %p339 = scmp.eq.s32.totalorder %s25, 0
    %p340 = por %p338, %p339
    %p341 = scmp.le.s32.totalorder 1, %s19
    %p342 = scmp.lt.s32.totalorder %s19, 3
    %p343 = pnand %p341, %p342
    %p344 = pneg %p343
    // Predicated region
    $region9: #{_encoder_forward_impl.1} parent=5 // pred_check
      _
    $region10: #{_encoder_forward_impl.1} parent=5 // pred_check_branch
      %346 = sbr.rel (%p343) target = $region12
    $region11: #{_encoder_forward_impl.1} parent=5 // pred_region
      %s347 = ssub.s32 %s19, 1
      // Predicated region
      $region13: #{_encoder_forward_impl.1} parent=11 // pred_check
        %p348 = pneg %p118
      $region14: #{_encoder_forward_impl.1} parent=11 // pred_check_branch
        %350 = sbr.rel (%p348) target = $region16
      $region15: #{_encoder_forward_impl.1} parent=11 // pred_region
        _
      $region16: #{_encoder_forward_impl.1} parent=11 // pred_fallthru
        _
      // Predicated region
      $region17: #{_encoder_forward_impl.1} parent=11 // pred_check
        %p351 = pneg %p139
      $region18: #{_encoder_forward_impl.1} parent=11 // pred_check_branch
        %353 = sbr.rel (%p351) target = $region20
      $region19: #{_encoder_forward_impl.1} parent=11 // pred_region
        _
      $region20: #{_encoder_forward_impl.1} parent=11 // pred_fallthru
        _
      // Predicated region
      $region21: #{_encoder_forward_impl.1} parent=11 // pred_check
        %p354 = pneg %p160
      $region22: #{_encoder_forward_impl.1} parent=11 // pred_check_branch
        %356 = sbr.rel (%p354) target = $region24
      $region23: #{_encoder_forward_impl.1} parent=11 // pred_region
        _
      $region24: #{_encoder_forward_impl.1} parent=11 // pred_fallthru
        _
      // Predicated region
      $region25: #{_encoder_forward_impl.1} parent=11 // pred_check
        %p357 = pneg %p181
      $region26: #{_encoder_forward_impl.1} parent=11 // pred_check_branch
        %359 = sbr.rel (%p357) target = $region28
      $region27: #{_encoder_forward_impl.1} parent=11 // pred_region
        _
      $region28: #{_encoder_forward_impl.1} parent=11 // pred_fallthru
        _
      // Predicated region
      $region29: #{_encoder_forward_impl.1} parent=11 // pred_check
        %p360 = pneg %p202
      $region30: #{_encoder_forward_impl.1} parent=11 // pred_check_branch
        %362 = sbr.rel (%p360) target = $region32
      $region31: #{_encoder_forward_impl.1} parent=11 // pred_region
        _
      $region32: #{_encoder_forward_impl.1} parent=11 // pred_fallthru
        _
      // Predicated region
      $region33: #{_encoder_forward_impl.1} parent=11 // pred_check
        %p363 = pneg %p223
      $region34: #{_encoder_forward_impl.1} parent=11 // pred_check_branch
        %365 = sbr.rel (%p363) target = $region36
      $region35: #{_encoder_forward_impl.1} parent=11 // pred_region
        _
      $region36: #{_encoder_forward_impl.1} parent=11 // pred_fallthru
        _
      // Predicated region
      $region37: #{_encoder_forward_impl.1} parent=11 // pred_check
        %p366 = pneg %p244
      $region38: #{_encoder_forward_impl.1} parent=11 // pred_check_branch
        %368 = sbr.rel (%p366) target = $region40
      $region39: #{_encoder_forward_impl.1} parent=11 // pred_region
        _
      $region40: #{_encoder_forward_impl.1} parent=11 // pred_fallthru
        _
      // Predicated region
      $region41: #{_encoder_forward_impl.1} parent=11 // pred_check
        %p369 = pneg %p265
      $region42: #{_encoder_forward_impl.1} parent=11 // pred_check_branch
        %371 = sbr.rel (%p369) target = $region44
      $region43: #{_encoder_forward_impl.1} parent=11 // pred_region
        _
      $region44: #{_encoder_forward_impl.1} parent=11 // pred_fallthru
        _
      // Predicated region
      $region45: #{_encoder_forward_impl.1} parent=11 // pred_check
        %p372 = pneg %p286
      $region46: #{_encoder_forward_impl.1} parent=11 // pred_check_branch
        %374 = sbr.rel (%p372) target = $region48
      $region47: #{_encoder_forward_impl.1} parent=11 // pred_region
        _
      $region48: #{_encoder_forward_impl.1} parent=11 // pred_fallthru
        _
      // Predicated region
      $region49: #{_encoder_forward_impl.1} parent=11 // pred_check
        %p375 = pneg %p307
      $region50: #{_encoder_forward_impl.1} parent=11 // pred_check_branch
        %377 = sbr.rel (%p375) target = $region52
      $region51: #{_encoder_forward_impl.1} parent=11 // pred_region
        _
      $region52: #{_encoder_forward_impl.1} parent=11 // pred_fallthru
        _
    $region12: #{_encoder_forward_impl.1} parent=5 // pred_fallthru
      _
    %p378 = scmp.lt.s32.totalorder %s19, 2
    // Predicated region
    $region53: #{_encoder_forward_impl.1} parent=5 // pred_check
      %p379 = pneg %p378
    $region54: #{_encoder_forward_impl.1} parent=5 // pred_check_branch
      %381 = sbr.rel (%p379) target = $region56
    $region55: #{_encoder_forward_impl.1} parent=5 // pred_region
      // Predicated region
      $region57: #{_encoder_forward_impl.1} parent=55 // pred_check
        %p382 = pneg %p39
      $region58: #{_encoder_forward_impl.1} parent=55 // pred_check_branch
        %384 = sbr.rel (%p382) target = $region60
      $region59: #{_encoder_forward_impl.1} parent=55 // pred_region
        %p385 = scmp.lt.s32.totalorder %s19, 1
        %s386 = scalar_select %p385, %s19, 1
        %s387 = smul.addr %s386, 16
        %s388 = smul.addr %s387, 4
        %s389 = scalar_lea.vmem %s0, %s388
      $region60: #{_encoder_forward_impl.1} parent=55 // pred_fallthru
        _
      // Predicated region
      $region61: #{_encoder_forward_impl.1} parent=55 // pred_check
        %p390 = pneg %p65
      $region62: #{_encoder_forward_impl.1} parent=55 // pred_check_branch
        %392 = sbr.rel (%p390) target = $region64
      $region63: #{_encoder_forward_impl.1} parent=55 // pred_region
        %p393 = scmp.lt.s32.totalorder %s19, 1
        %s394 = scalar_select %p393, %s19, 1
        %s395 = smul.addr %s394, 16
        %s396 = smul.addr %s395, 4
        %s397 = scalar_lea.vmem %s1, %s396
      $region64: #{_encoder_forward_impl.1} parent=55 // pred_fallthru
        _
      // Predicated region
      $region65: #{_encoder_forward_impl.1} parent=55 // pred_check
        %p398 = pneg %p91
      $region66: #{_encoder_forward_impl.1} parent=55 // pred_check_branch
        %400 = sbr.rel (%p398) target = $region68
      $region67: #{_encoder_forward_impl.1} parent=55 // pred_region
        %p401 = scmp.lt.s32.totalorder %s19, 1
        %s402 = scalar_select %p401, %s19, 1
        %s403 = smul.addr %s402, 8
        %s404 = smul.addr %s403, 4
        %s405 = scalar_lea.vmem %s2, %s404
      $region68: #{_encoder_forward_impl.1} parent=55 // pred_fallthru
        _
    $region56: #{_encoder_forward_impl.1} parent=5 // pred_fallthru
      _
    %p406 = scmp.le.s32.totalorder 1, %s19
    %p407 = scmp.lt.s32.totalorder %s19, 3
    %p408 = pnand %p406, %p407
    %p409 = pneg %p408
    // Predicated region
    $region69: #{_encoder_forward_impl.1} parent=5 // pred_check
      _
    $region70: #{_encoder_forward_impl.1} parent=5 // pred_check_branch
      %411 = sbr.rel (%p408) target = $region72
    $region71: #{_encoder_forward_impl.1} parent=5 // pred_region
      %s412 = ssub.s32 %s19, 1
      %p413 = scmp.lt.s32.totalorder %s24, 1
      %s414 = scalar_select %p413, %s24, 1
      %s415 = smul.addr %s414, 16
      %s416 = smul.addr %s415, 4
      %s417 = scalar_lea.vmem %s0, %s416
      %p418 = pneg %p45
      %p419 = pneg %p42
      %p420 = scmp.lt.s32.totalorder %s24, 1
      %s421 = scalar_select %p420, %s24, 1
      %s422 = smul.addr %s421, 16
      %s423 = smul.addr %s422, 4
      %s424 = scalar_lea.vmem %s1, %s423
      %p425 = pneg %p71
      %p426 = pneg %p68
      %p427 = scmp.lt.s32.totalorder %s24, 1
      %s428 = scalar_select %p427, %s24, 1
      %s429 = smul.addr %s428, 8
      %s430 = smul.addr %s429, 4
      %s431 = scalar_lea.vmem %s2, %s430
      %p432 = pneg %p97
      %p433 = pneg %p94
      %p434 = pneg %p118
      %p435 = pneg %p115
      %p436 = pneg %p139
      %p437 = pneg %p136
      %p438 = pneg %p160
      %p439 = pneg %p157
      %p440 = pneg %p181
      %p441 = pneg %p178
      %p442 = pneg %p202
      %p443 = pneg %p199
      %p444 = pneg %p223
      %p445 = pneg %p220
      %p446 = pneg %p244
      %p447 = pneg %p241
      %p448 = pneg %p265
      %p449 = pneg %p262
      %p450 = pneg %p286
      %p451 = pneg %p283
      %p452 = pneg %p307
      %p453 = pneg %p304
      %p454 = pneg %p333
      %p455 = pneg %p330
      %p456 = scmp.lt.s32.totalorder %s24, 1
      %s457 = scalar_select %p456, %s24, 1
      %s458 = smul.addr %s457, 8
      %s459 = smul.addr %s458, 8
      %s460 = scalar_lea.vmem %s13, %s459
      %p461 = scmp.lt.s32.totalorder %s24, 1
      %s462 = scalar_select %p461, %s24, 1
      %s463 = smul.addr %s462, 16
      %s464 = smul.addr %s463, 4
      %s465 = scalar_lea.vmem %s0, %s464
      %p466 = scmp.lt.s32.totalorder %s24, 1
      %s467 = scalar_select %p466, %s24, 1
      %s468 = smul.addr %s467, 16
      %s469 = smul.addr %s468, 4
      %s470 = scalar_lea.vmem %s1, %s469
      %p471 = scmp.lt.s32.totalorder %s24, 1
      %s472 = scalar_select %p471, %s24, 1
      %s473 = smul.addr %s472, 8
      %s474 = smul.addr %s473, 4
      %s475 = scalar_lea.vmem %s2, %s474
      %p476 = scmp.lt.s32.totalorder %s24, 1
      %s477 = scalar_select %p476, %s24, 1
      %s478 = smul.addr %s477, 8
      %s479 = smul.addr %s478, 8
      %s480 = scalar_lea.vmem %s13, %s479
      %v482 = vld [vmem:[%s465] sm:$0xf]
      %v483 = vld [vmem:[%s465 + $0x4] sm:$0xf]
      %v484 = vld [vmem:[%s465 + $0x8] sm:$0xf]
      %v485 = vld [vmem:[%s465 + $0xc] sm:$0xf]
      %v486 = vld [vmem:[%s465 + $0x10] sm:$0xf]
      %v487 = vld [vmem:[%s465 + $0x14] sm:$0xf]
      %v488 = vld [vmem:[%s465 + $0x18] sm:$0xf]
      %v489 = vld [vmem:[%s465 + $0x1c] sm:$0xf]
      %v490 = vld [vmem:[%s465 + $0x20] sm:$0xf]
      %v491 = vld [vmem:[%s465 + $0x24] sm:$0xf]
      %v492 = vld [vmem:[%s465 + $0x28] sm:$0xf]
      %v493 = vld [vmem:[%s465 + $0x2c] sm:$0xf]
      %v494 = vld [vmem:[%s465 + $0x30] sm:$0xf]
      %v495 = vld [vmem:[%s465 + $0x34] sm:$0xf]
      %v496 = vld [vmem:[%s465 + $0x38] sm:$0xf]
      %v497 = vld [vmem:[%s465 + $0x3c] sm:$0xf]
      %v498 = vld [vmem:[%s470] sm:$0xf]
      %v499 = vld [vmem:[%s470 + $0x4] sm:$0xf]
      %v500 = vld [vmem:[%s470 + $0x8] sm:$0xf]
      %v501 = vld [vmem:[%s470 + $0xc] sm:$0xf]
      %v502 = vld [vmem:[%s470 + $0x10] sm:$0xf]
      %v503 = vld [vmem:[%s470 + $0x14] sm:$0xf]
      %v504 = vld [vmem:[%s470 + $0x18] sm:$0xf]
      %v505 = vld [vmem:[%s470 + $0x1c] sm:$0xf]
      %v506 = vld [vmem:[%s470 + $0x20] sm:$0xf]
      %v507 = vld [vmem:[%s470 + $0x24] sm:$0xf]
      %v508 = vld [vmem:[%s470 + $0x28] sm:$0xf]
      %v509 = vld [vmem:[%s470 + $0x2c] sm:$0xf]
      %v510 = vld [vmem:[%s470 + $0x30] sm:$0xf]
      %v511 = vld [vmem:[%s470 + $0x34] sm:$0xf]
      %v512 = vld [vmem:[%s470 + $0x38] sm:$0xf]
      %v513 = vld [vmem:[%s470 + $0x3c] sm:$0xf]
      %v530 = vunpack.c.l.b16 %v482
      %v531 = vunpack.c.l.b16 %v483
      %v532 = vunpack.c.l.b16 %v484
      %v533 = vunpack.c.l.b16 %v485
      %v534 = vunpack.c.l.b16 %v486
      %v535 = vunpack.c.l.b16 %v487
      %v536 = vunpack.c.l.b16 %v488
      %v537 = vunpack.c.l.b16 %v489
      %v538 = vunpack.c.l.b16 %v490
      %v539 = vunpack.c.l.b16 %v491
      %v540 = vunpack.c.l.b16 %v492
      %v541 = vunpack.c.l.b16 %v493
      %v542 = vunpack.c.l.b16 %v494
      %v543 = vunpack.c.l.b16 %v495
      %v544 = vunpack.c.l.b16 %v496
      %v545 = vunpack.c.l.b16 %v497
      %v546 = vpack.c.b16 %v531, %v530
      %v547 = vpack.c.b16 %v533, %v532
      %v548 = vpack.c.b16 %v535, %v534
      %v549 = vpack.c.b16 %v537, %v536
      %v550 = vpack.c.b16 %v539, %v538
      %v551 = vpack.c.b16 %v541, %v540
      %v552 = vpack.c.b16 %v543, %v542
      %v553 = vpack.c.b16 %v545, %v544
      %v578 = vunpack.c.l.b16 %v498
      %v579 = vunpack.c.l.b16 %v499
      %v580 = vunpack.c.l.b16 %v500
      %v581 = vunpack.c.l.b16 %v501
      %v582 = vunpack.c.l.b16 %v502
      %v583 = vunpack.c.l.b16 %v503
      %v584 = vunpack.c.l.b16 %v504
      %v585 = vunpack.c.l.b16 %v505
      %v586 = vunpack.c.l.b16 %v506
      %v587 = vunpack.c.l.b16 %v507
      %v588 = vunpack.c.l.b16 %v508
      %v589 = vunpack.c.l.b16 %v509
      %v590 = vunpack.c.l.b16 %v510
      %v591 = vunpack.c.l.b16 %v511
      %v592 = vunpack.c.l.b16 %v512
      %v593 = vunpack.c.l.b16 %v513
      %v594 = vpack.c.b16 %v579, %v578
      %v595 = vpack.c.b16 %v581, %v580
      %v596 = vpack.c.b16 %v583, %v582
      %v597 = vpack.c.b16 %v585, %v584
      %v598 = vpack.c.b16 %v587, %v586
      %v599 = vpack.c.b16 %v589, %v588
      %v600 = vpack.c.b16 %v591, %v590
      %v601 = vpack.c.b16 %v593, %v592
      %610 = vmatprep.subr.bf16.mxu0 0
      %611 = vmatpush1.bf16.msra.mxu0 %v601
      %612 = vmatprep.subr.bf16.mxu0 0
      %613 = vmatpush1.bf16.msra.mxu0 %v600
      %614 = vmatprep.subr.bf16.mxu0 0
      %615 = vmatpush1.bf16.msra.mxu0 %v599
      %616 = vmatprep.subr.bf16.mxu0 0
      %617 = vmatpush1.bf16.msra.mxu0 %v598
      %618 = vmatprep.subr.bf16.mxu0 0
      %619 = vmatpush1.bf16.msra.mxu0 %v597
      %620 = vmatprep.subr.bf16.mxu0 0
      %621 = vmatpush1.bf16.msra.mxu0 %v596
      %622 = vmatprep.subr.bf16.mxu0 0
      %623 = vmatpush1.bf16.msra.mxu0 %v595
      %624 = vmatprep.subr.bf16.mxu0 0
      %625 = vmatpush1.bf16.msra.mxu0 %v594
      %626 = vmatprep.subr.bf16.mxu0 0
      %627 = vmatpush2.bf16.msra.mxu0 0
      %628 = vmatprep.subr.bf16.mxu0 0
      %629 = vmatpush2.bf16.msra.mxu0 0
      %630 = vmatprep.subr.bf16.mxu0 0
      %631 = vmatpush2.bf16.msra.mxu0 0
      %632 = vmatprep.subr.bf16.mxu0 0
      %633 = vmatpush2.bf16.msra.mxu0 0
      %634 = vmatprep.subr.bf16.mxu0 0
      %635 = vmatpush2.bf16.msra.mxu0 0
      %636 = vmatprep.subr.bf16.mxu0 0
      %637 = vmatpush2.bf16.msra.mxu0 0
      %638 = vmatprep.subr.bf16.mxu0 0
      %639 = vmatpush2.bf16.msra.mxu0 0
      %640 = vmatprep.subr.bf16.mxu0 0
      %641 = vmatpush2.bf16.msra.mxu0 0
      %642 = vmatprep.mubr.bf16.mxu0 0
      %643 = vmatmul.mubr.bf16.gmra.mxu0 %v546
      %v644 = vpop.f32.mrf.mxu0
      %v645 = vadd.f32 0.0, %v644
      %v646 = vpop.f32.mrf.mxu0
      %v647 = vpop.f32.mrf.mxu0
      %v648 = vadd.f32 0.0, %v647
      %v649 = vpop.f32.mrf.mxu0
      %650 = vmatprep.mubr.bf16.mxu0 0
      %651 = vmatmul.mubr.bf16.gmra.mxu0 %v547
      %v652 = vpop.f32.mrf.mxu0
      %v653 = vadd.f32 0.0, %v652
      %v654 = vpop.f32.mrf.mxu0
      %v655 = vpop.f32.mrf.mxu0
      %v656 = vadd.f32 0.0, %v655
      %v657 = vpop.f32.mrf.mxu0
      %658 = vmatprep.mubr.bf16.mxu0 0
      %659 = vmatmul.mubr.bf16.gmra.mxu0 %v548
      %v660 = vpop.f32.mrf.mxu0
      %v661 = vadd.f32 0.0, %v660
      %v662 = vpop.f32.mrf.mxu0
      %v663 = vpop.f32.mrf.mxu0
      %v664 = vadd.f32 0.0, %v663
      %v665 = vpop.f32.mrf.mxu0
      %666 = vmatprep.mubr.bf16.mxu0 0
      %667 = vmatmul.mubr.bf16.gmra.mxu0 %v549
      %v668 = vpop.f32.mrf.mxu0
      %v669 = vadd.f32 0.0, %v668
      %v670 = vpop.f32.mrf.mxu0
      %v671 = vpop.f32.mrf.mxu0
      %v672 = vadd.f32 0.0, %v671
      %v673 = vpop.f32.mrf.mxu0
      %674 = vmatprep.mubr.bf16.mxu0 0
      %675 = vmatmul.mubr.bf16.gmra.mxu0 %v550
      %v676 = vpop.f32.mrf.mxu0
      %v677 = vadd.f32 0.0, %v676
      %v678 = vpop.f32.mrf.mxu0
      %v679 = vpop.f32.mrf.mxu0
      %v680 = vadd.f32 0.0, %v679
      %v681 = vpop.f32.mrf.mxu0
      %682 = vmatprep.mubr.bf16.mxu0 0
      %683 = vmatmul.mubr.bf16.gmra.mxu0 %v551
      %v684 = vpop.f32.mrf.mxu0
      %v685 = vadd.f32 0.0, %v684
      %v686 = vpop.f32.mrf.mxu0
      %v687 = vpop.f32.mrf.mxu0
      %v688 = vadd.f32 0.0, %v687
      %v689 = vpop.f32.mrf.mxu0
      %690 = vmatprep.mubr.bf16.mxu0 0
      %691 = vmatmul.mubr.bf16.gmra.mxu0 %v552
      %v692 = vpop.f32.mrf.mxu0
      %v693 = vadd.f32 0.0, %v692
      %v694 = vpop.f32.mrf.mxu0
      %v695 = vpop.f32.mrf.mxu0
      %v696 = vadd.f32 0.0, %v695
      %v697 = vpop.f32.mrf.mxu0
      %698 = vmatprep.mubr.bf16.mxu0 0
      %699 = vmatmul.mubr.bf16.gmra.mxu0 %v553
      %v700 = vpop.f32.mrf.mxu0
      %v701 = vadd.f32 0.0, %v700
      %v702 = vpop.f32.mrf.mxu0
      %v703 = vpop.f32.mrf.mxu0
      %v704 = vadd.f32 0.0, %v703
      %v705 = vpop.f32.mrf.mxu0
      %706 = vdwg.mxu0
      %v707 = vpack.c.bf16 %v648, %v645
      %v708 = vpack.c.bf16 %v656, %v653
      %v709 = vpack.c.bf16 %v664, %v661
      %v710 = vpack.c.bf16 %v672, %v669
      %v711 = vpack.c.bf16 %v680, %v677
      %v712 = vpack.c.bf16 %v688, %v685
      %v713 = vpack.c.bf16 %v696, %v693
      %v714 = vpack.c.bf16 %v704, %v701
      %v715 = vld [vmem:[%s3] sm:$0xf]
      %v716 = vld [vmem:[%s3 + $0x4] sm:$0xf]
      %v717 = vld [vmem:[%s3 + $0x8] sm:$0xf]
      %v718 = vld [vmem:[%s3 + $0xc] sm:$0xf]
      %v719 = vld [vmem:[%s3 + $0x10] sm:$0xf]
      %v720 = vld [vmem:[%s3 + $0x14] sm:$0xf]
      %v721 = vld [vmem:[%s3 + $0x18] sm:$0xf]
      %v722 = vld [vmem:[%s3 + $0x1c] sm:$0xf]
      %v723 = vld [vmem:[%s3 + $0x20] sm:$0xf]
      %v724 = vld [vmem:[%s3 + $0x24] sm:$0xf]
      %v725 = vld [vmem:[%s3 + $0x28] sm:$0xf]
      %v726 = vld [vmem:[%s3 + $0x2c] sm:$0xf]
      %v727 = vld [vmem:[%s3 + $0x30] sm:$0xf]
      %v728 = vld [vmem:[%s3 + $0x34] sm:$0xf]
      %v729 = vld [vmem:[%s3 + $0x38] sm:$0xf]
      %v730 = vld [vmem:[%s3 + $0x3c] sm:$0xf]
      %v731 = vld [vmem:[%s4] sm:$0x1]
      %v733 = vlaneseq
      %v734 = vshrl.u32 %v733, 7
      %v735 = vsub.s32 0, %v734
      %v736 = vrot.slane %v731, %v735
      %v754 = vunpack.c.l.b16 %v715
      %v755 = vunpack.c.l.b16 %v716
      %v756 = vunpack.c.l.b16 %v717
      %v757 = vunpack.c.l.b16 %v718
      %v758 = vunpack.c.l.b16 %v719
      %v759 = vunpack.c.l.b16 %v720
      %v760 = vunpack.c.l.b16 %v721
      %v761 = vunpack.c.l.b16 %v722
      %v762 = vunpack.c.l.b16 %v723
      %v763 = vunpack.c.l.b16 %v724
      %v764 = vunpack.c.l.b16 %v725
      %v765 = vunpack.c.l.b16 %v726
      %v766 = vunpack.c.l.b16 %v727
      %v767 = vunpack.c.l.b16 %v728
      %v768 = vunpack.c.l.b16 %v729
      %v769 = vunpack.c.l.b16 %v730
      %v770 = vpack.c.b16 %v755, %v754
      %v771 = vpack.c.b16 %v757, %v756
      %v772 = vpack.c.b16 %v759, %v758
      %v773 = vpack.c.b16 %v761, %v760
      %v774 = vpack.c.b16 %v763, %v762
      %v775 = vpack.c.b16 %v765, %v764
      %v776 = vpack.c.b16 %v767, %v766
      %v777 = vpack.c.b16 %v769, %v768
      %786 = vmatprep.subr.bf16.mxu0 0
      %787 = vmatpush1.bf16.msra.mxu0 %v777
      %788 = vmatprep.subr.bf16.mxu0 0
      %789 = vmatpush1.bf16.msra.mxu0 %v776
      %790 = vmatprep.subr.bf16.mxu0 0
      %791 = vmatpush1.bf16.msra.mxu0 %v775
      %792 = vmatprep.subr.bf16.mxu0 0
      %793 = vmatpush1.bf16.msra.mxu0 %v774
      %794 = vmatprep.subr.bf16.mxu0 0
      %795 = vmatpush1.bf16.msra.mxu0 %v773
      %796 = vmatprep.subr.bf16.mxu0 0
      %797 = vmatpush1.bf16.msra.mxu0 %v772
      %798 = vmatprep.subr.bf16.mxu0 0
      %799 = vmatpush1.bf16.msra.mxu0 %v771
      %800 = vmatprep.subr.bf16.mxu0 0
      %801 = vmatpush1.bf16.msra.mxu0 %v770
      %802 = vmatprep.subr.bf16.mxu0 0
      %803 = vmatpush2.bf16.msra.mxu0 0
      %804 = vmatprep.subr.bf16.mxu0 0
      %805 = vmatpush2.bf16.msra.mxu0 0
      %806 = vmatprep.subr.bf16.mxu0 0
      %807 = vmatpush2.bf16.msra.mxu0 0
      %808 = vmatprep.subr.bf16.mxu0 0
      %809 = vmatpush2.bf16.msra.mxu0 0
      %810 = vmatprep.subr.bf16.mxu0 0
      %811 = vmatpush2.bf16.msra.mxu0 0
      %812 = vmatprep.subr.bf16.mxu0 0
      %813 = vmatpush2.bf16.msra.mxu0 0
      %814 = vmatprep.subr.bf16.mxu0 0
      %815 = vmatpush2.bf16.msra.mxu0 0
      %816 = vmatprep.subr.bf16.mxu0 0
      %817 = vmatpush2.bf16.msra.mxu0 0
      %818 = vmatprep.mubr.bf16.mxu0 0
      %819 = vmatmul.mubr.bf16.gmra.mxu0 %v707
      %v820 = vpop.f32.mrf.mxu0
      %v821 = vadd.f32 %v736, %v820
      %v822 = vpop.f32.mrf.mxu0
      %v823 = vpop.f32.mrf.mxu0
      %v824 = vadd.f32 %v736, %v823
      %v825 = vpop.f32.mrf.mxu0
      %826 = vmatprep.mubr.bf16.mxu0 0
      %827 = vmatmul.mubr.bf16.gmra.mxu0 %v708
      %v828 = vpop.f32.mrf.mxu0
      %v829 = vadd.f32 %v736, %v828
      %v830 = vpop.f32.mrf.mxu0
      %v831 = vpop.f32.mrf.mxu0
      %v832 = vadd.f32 %v736, %v831
      %v833 = vpop.f32.mrf.mxu0
      %834 = vmatprep.mubr.bf16.mxu0 0
      %835 = vmatmul.mubr.bf16.gmra.mxu0 %v709
      %v836 = vpop.f32.mrf.mxu0
      %v837 = vadd.f32 %v736, %v836
      %v838 = vpop.f32.mrf.mxu0
      %v839 = vpop.f32.mrf.mxu0
      %v840 = vadd.f32 %v736, %v839
      %v841 = vpop.f32.mrf.mxu0
      %842 = vmatprep.mubr.bf16.mxu0 0
      %843 = vmatmul.mubr.bf16.gmra.mxu0 %v710
      %v844 = vpop.f32.mrf.mxu0
      %v845 = vadd.f32 %v736, %v844
      %v846 = vpop.f32.mrf.mxu0
      %v847 = vpop.f32.mrf.mxu0
      %v848 = vadd.f32 %v736, %v847
      %v849 = vpop.f32.mrf.mxu0
      %850 = vmatprep.mubr.bf16.mxu0 0
      %851 = vmatmul.mubr.bf16.gmra.mxu0 %v711
      %v852 = vpop.f32.mrf.mxu0
      %v853 = vadd.f32 %v736, %v852
      %v854 = vpop.f32.mrf.mxu0
      %v855 = vpop.f32.mrf.mxu0
      %v856 = vadd.f32 %v736, %v855
      %v857 = vpop.f32.mrf.mxu0
      %858 = vmatprep.mubr.bf16.mxu0 0
      %859 = vmatmul.mubr.bf16.gmra.mxu0 %v712
      %v860 = vpop.f32.mrf.mxu0
      %v861 = vadd.f32 %v736, %v860
      %v862 = vpop.f32.mrf.mxu0
      %v863 = vpop.f32.mrf.mxu0
      %v864 = vadd.f32 %v736, %v863
      %v865 = vpop.f32.mrf.mxu0
      %866 = vmatprep.mubr.bf16.mxu0 0
      %867 = vmatmul.mubr.bf16.gmra.mxu0 %v713
      %v868 = vpop.f32.mrf.mxu0
      %v869 = vadd.f32 %v736, %v868
      %v870 = vpop.f32.mrf.mxu0
      %v871 = vpop.f32.mrf.mxu0
      %v872 = vadd.f32 %v736, %v871
      %v873 = vpop.f32.mrf.mxu0
      %874 = vmatprep.mubr.bf16.mxu0 0
      %875 = vmatmul.mubr.bf16.gmra.mxu0 %v714
      %v876 = vpop.f32.mrf.mxu0
      %v877 = vadd.f32 %v736, %v876
      %v878 = vpop.f32.mrf.mxu0
      %v879 = vpop.f32.mrf.mxu0
      %v880 = vadd.f32 %v736, %v879
      %v881 = vpop.f32.mrf.mxu0
      %882 = vdwg.mxu0
      %v883 = vmax.f32 %v821, 0.0
      %v884 = vmax.f32 %v824, 0.0
      %v885 = vmax.f32 %v829, 0.0
      %v886 = vmax.f32 %v832, 0.0
      %v887 = vmax.f32 %v837, 0.0
      %v888 = vmax.f32 %v840, 0.0
      %v889 = vmax.f32 %v845, 0.0
      %v890 = vmax.f32 %v848, 0.0
      %v891 = vmax.f32 %v853, 0.0
      %v892 = vmax.f32 %v856, 0.0
      %v893 = vmax.f32 %v861, 0.0
      %v894 = vmax.f32 %v864, 0.0
      %v895 = vmax.f32 %v869, 0.0
      %v896 = vmax.f32 %v872, 0.0
      %v897 = vmax.f32 %v877, 0.0
      %v898 = vmax.f32 %v880, 0.0
      %v899 = vpack.c.bf16 %v884, %v883
      %v900 = vpack.c.bf16 %v886, %v885
      %v901 = vpack.c.bf16 %v888, %v887
      %v902 = vpack.c.bf16 %v890, %v889
      %v903 = vpack.c.bf16 %v892, %v891
      %v904 = vpack.c.bf16 %v894, %v893
      %v905 = vpack.c.bf16 %v896, %v895
      %v906 = vpack.c.bf16 %v898, %v897
      %v907 = vld [vmem:[%s5] sm:$0xf]
      %v908 = vld [vmem:[%s5 + $0x4] sm:$0xf]
      %v909 = vld [vmem:[%s5 + $0x8] sm:$0xf]
      %v910 = vld [vmem:[%s5 + $0xc] sm:$0xf]
      %v911 = vld [vmem:[%s5 + $0x10] sm:$0xf]
      %v912 = vld [vmem:[%s5 + $0x14] sm:$0xf]
      %v913 = vld [vmem:[%s5 + $0x18] sm:$0xf]
      %v914 = vld [vmem:[%s5 + $0x1c] sm:$0xf]
      %v915 = vld [vmem:[%s5 + $0x20] sm:$0xf]
      %v916 = vld [vmem:[%s5 + $0x24] sm:$0xf]
      %v917 = vld [vmem:[%s5 + $0x28] sm:$0xf]
      %v918 = vld [vmem:[%s5 + $0x2c] sm:$0xf]
      %v919 = vld [vmem:[%s5 + $0x30] sm:$0xf]
      %v920 = vld [vmem:[%s5 + $0x34] sm:$0xf]
      %v921 = vld [vmem:[%s5 + $0x38] sm:$0xf]
      %v922 = vld [vmem:[%s5 + $0x3c] sm:$0xf]
      %v923 = vld [vmem:[%s6] sm:$0x1]
      %v925 = vlaneseq
      %v926 = vshrl.u32 %v925, 7
      %v927 = vsub.s32 0, %v926
      %v928 = vrot.slane %v923, %v927
      %v946 = vunpack.c.l.b16 %v907
      %v947 = vunpack.c.l.b16 %v908
      %v948 = vunpack.c.l.b16 %v909
      %v949 = vunpack.c.l.b16 %v910
      %v950 = vunpack.c.l.b16 %v911
      %v951 = vunpack.c.l.b16 %v912
      %v952 = vunpack.c.l.b16 %v913
      %v953 = vunpack.c.l.b16 %v914
      %v954 = vunpack.c.l.b16 %v915
      %v955 = vunpack.c.l.b16 %v916
      %v956 = vunpack.c.l.b16 %v917
      %v957 = vunpack.c.l.b16 %v918
      %v958 = vunpack.c.l.b16 %v919
      %v959 = vunpack.c.l.b16 %v920
      %v960 = vunpack.c.l.b16 %v921
      %v961 = vunpack.c.l.b16 %v922
      %v962 = vpack.c.b16 %v947, %v946
      %v963 = vpack.c.b16 %v949, %v948
      %v964 = vpack.c.b16 %v951, %v950
      %v965 = vpack.c.b16 %v953, %v952
      %v966 = vpack.c.b16 %v955, %v954
      %v967 = vpack.c.b16 %v957, %v956
      %v968 = vpack.c.b16 %v959, %v958
      %v969 = vpack.c.b16 %v961, %v960
      %978 = vmatprep.subr.bf16.mxu0 0
      %979 = vmatpush1.bf16.msra.mxu0 %v969
      %980 = vmatprep.subr.bf16.mxu0 0
      %981 = vmatpush1.bf16.msra.mxu0 %v968
      %982 = vmatprep.subr.bf16.mxu0 0
      %983 = vmatpush1.bf16.msra.mxu0 %v967
      %984 = vmatprep.subr.bf16.mxu0 0
      %985 = vmatpush1.bf16.msra.mxu0 %v966
      %986 = vmatprep.subr.bf16.mxu0 0
      %987 = vmatpush1.bf16.msra.mxu0 %v965
      %988 = vmatprep.subr.bf16.mxu0 0
      %989 = vmatpush1.bf16.msra.mxu0 %v964
      %990 = vmatprep.subr.bf16.mxu0 0
      %991 = vmatpush1.bf16.msra.mxu0 %v963
      %992 = vmatprep.subr.bf16.mxu0 0
      %993 = vmatpush1.bf16.msra.mxu0 %v962
      %994 = vmatprep.subr.bf16.mxu0 0
      %995 = vmatpush2.bf16.msra.mxu0 0
      %996 = vmatprep.subr.bf16.mxu0 0
      %997 = vmatpush2.bf16.msra.mxu0 0
      %998 = vmatprep.subr.bf16.mxu0 0
      %999 = vmatpush2.bf16.msra.mxu0 0
      %1000 = vmatprep.subr.bf16.mxu0 0
      %1001 = vmatpush2.bf16.msra.mxu0 0
      %1002 = vmatprep.subr.bf16.mxu0 0
      %1003 = vmatpush2.bf16.msra.mxu0 0
      %1004 = vmatprep.subr.bf16.mxu0 0
      %1005 = vmatpush2.bf16.msra.mxu0 0
      %1006 = vmatprep.subr.bf16.mxu0 0
      %1007 = vmatpush2.bf16.msra.mxu0 0
      %1008 = vmatprep.subr.bf16.mxu0 0
      %1009 = vmatpush2.bf16.msra.mxu0 0
      %1010 = vmatprep.mubr.bf16.mxu0 0
      %1011 = vmatmul.mubr.bf16.gmra.mxu0 %v899
      %v1012 = vpop.f32.mrf.mxu0
      %v1013 = vadd.f32 %v928, %v1012
      %v1014 = vpop.f32.mrf.mxu0
      %v1015 = vpop.f32.mrf.mxu0
      %v1016 = vadd.f32 %v928, %v1015
      %v1017 = vpop.f32.mrf.mxu0
      %1018 = vmatprep.mubr.bf16.mxu0 0
      %1019 = vmatmul.mubr.bf16.gmra.mxu0 %v900
      %v1020 = vpop.f32.mrf.mxu0
      %v1021 = vadd.f32 %v928, %v1020
      %v1022 = vpop.f32.mrf.mxu0
      %v1023 = vpop.f32.mrf.mxu0
      %v1024 = vadd.f32 %v928, %v1023
      %v1025 = vpop.f32.mrf.mxu0
      %1026 = vmatprep.mubr.bf16.mxu0 0
      %1027 = vmatmul.mubr.bf16.gmra.mxu0 %v901
      %v1028 = vpop.f32.mrf.mxu0
      %v1029 = vadd.f32 %v928, %v1028
      %v1030 = vpop.f32.mrf.mxu0
      %v1031 = vpop.f32.mrf.mxu0
      %v1032 = vadd.f32 %v928, %v1031
      %v1033 = vpop.f32.mrf.mxu0
      %1034 = vmatprep.mubr.bf16.mxu0 0
      %1035 = vmatmul.mubr.bf16.gmra.mxu0 %v902
      %v1036 = vpop.f32.mrf.mxu0
      %v1037 = vadd.f32 %v928, %v1036
      %v1038 = vpop.f32.mrf.mxu0
      %v1039 = vpop.f32.mrf.mxu0
      %v1040 = vadd.f32 %v928, %v1039
      %v1041 = vpop.f32.mrf.mxu0
      %1042 = vmatprep.mubr.bf16.mxu0 0
      %1043 = vmatmul.mubr.bf16.gmra.mxu0 %v903
      %v1044 = vpop.f32.mrf.mxu0
      %v1045 = vadd.f32 %v928, %v1044
      %v1046 = vpop.f32.mrf.mxu0
      %v1047 = vpop.f32.mrf.mxu0
      %v1048 = vadd.f32 %v928, %v1047
      %v1049 = vpop.f32.mrf.mxu0
      %1050 = vmatprep.mubr.bf16.mxu0 0
      %1051 = vmatmul.mubr.bf16.gmra.mxu0 %v904
      %v1052 = vpop.f32.mrf.mxu0
      %v1053 = vadd.f32 %v928, %v1052
      %v1054 = vpop.f32.mrf.mxu0
      %v1055 = vpop.f32.mrf.mxu0
      %v1056 = vadd.f32 %v928, %v1055
      %v1057 = vpop.f32.mrf.mxu0
      %1058 = vmatprep.mubr.bf16.mxu0 0
      %1059 = vmatmul.mubr.bf16.gmra.mxu0 %v905
      %v1060 = vpop.f32.mrf.mxu0
      %v1061 = vadd.f32 %v928, %v1060
      %v1062 = vpop.f32.mrf.mxu0
      %v1063 = vpop.f32.mrf.mxu0
      %v1064 = vadd.f32 %v928, %v1063
      %v1065 = vpop.f32.mrf.mxu0
      %1066 = vmatprep.mubr.bf16.mxu0 0
      %1067 = vmatmul.mubr.bf16.gmra.mxu0 %v906
      %v1068 = vpop.f32.mrf.mxu0
      %v1069 = vadd.f32 %v928, %v1068
      %v1070 = vpop.f32.mrf.mxu0
      %v1071 = vpop.f32.mrf.mxu0
      %v1072 = vadd.f32 %v928, %v1071
      %v1073 = vpop.f32.mrf.mxu0
      %1074 = vdwg.mxu0
      %v1075 = vmax.f32 %v1013, 0.0
      %v1076 = vmax.f32 %v1016, 0.0
      %v1077 = vmax.f32 %v1021, 0.0
      %v1078 = vmax.f32 %v1024, 0.0
      %v1079 = vmax.f32 %v1029, 0.0
      %v1080 = vmax.f32 %v1032, 0.0
      %v1081 = vmax.f32 %v1037, 0.0
      %v1082 = vmax.f32 %v1040, 0.0
      %v1083 = vmax.f32 %v1045, 0.0
      %v1084 = vmax.f32 %v1048, 0.0
      %v1085 = vmax.f32 %v1053, 0.0
      %v1086 = vmax.f32 %v1056, 0.0
      %v1087 = vmax.f32 %v1061, 0.0
      %v1088 = vmax.f32 %v1064, 0.0
      %v1089 = vmax.f32 %v1069, 0.0
      %v1090 = vmax.f32 %v1072, 0.0
      %v1091 = vpack.c.bf16 %v1076, %v1075
      %v1092 = vpack.c.bf16 %v1078, %v1077
      %v1093 = vpack.c.bf16 %v1080, %v1079
      %v1094 = vpack.c.bf16 %v1082, %v1081
      %v1095 = vpack.c.bf16 %v1084, %v1083
      %v1096 = vpack.c.bf16 %v1086, %v1085
      %v1097 = vpack.c.bf16 %v1088, %v1087
      %v1098 = vpack.c.bf16 %v1090, %v1089
      %1099 = vmatprep.subr.bf16.mxu0 0
      %1100 = vmatpush1.bf16.msra.mxu0 %v1098
      %1101 = vmatprep.subr.bf16.mxu0 0
      %1102 = vmatpush1.bf16.msra.mxu0 %v1097
      %1103 = vmatprep.subr.bf16.mxu0 0
      %1104 = vmatpush1.bf16.msra.mxu0 %v1096
      %1105 = vmatprep.subr.bf16.mxu0 0
      %1106 = vmatpush1.bf16.msra.mxu0 %v1095
      %1107 = vmatprep.subr.bf16.mxu0 0
      %1108 = vmatpush1.bf16.msra.mxu0 %v1094
      %1109 = vmatprep.subr.bf16.mxu0 0
      %1110 = vmatpush1.bf16.msra.mxu0 %v1093
      %1111 = vmatprep.subr.bf16.mxu0 0
      %1112 = vmatpush1.bf16.msra.mxu0 %v1092
      %1113 = vmatprep.subr.bf16.mxu0 0
      %1114 = vmatpush1.bf16.msra.mxu0 %v1091
      %1115 = vmatprep.subr.bf16.mxu0 0
      %1116 = vmatpush2.bf16.msra.mxu0 0
      %1117 = vmatprep.subr.bf16.mxu0 0
      %1118 = vmatpush2.bf16.msra.mxu0 0
      %1119 = vmatprep.subr.bf16.mxu0 0
      %1120 = vmatpush2.bf16.msra.mxu0 0
      %1121 = vmatprep.subr.bf16.mxu0 0
      %1122 = vmatpush2.bf16.msra.mxu0 0
      %1123 = vmatprep.subr.bf16.mxu0 0
      %1124 = vmatpush2.bf16.msra.mxu0 0
      %1125 = vmatprep.subr.bf16.mxu0 0
      %1126 = vmatpush2.bf16.msra.mxu0 0
      %1127 = vmatprep.subr.bf16.mxu0 0
      %1128 = vmatpush2.bf16.msra.mxu0 0
      %1129 = vmatprep.subr.bf16.mxu0 0
      %1130 = vmatpush2.bf16.msra.mxu0 0
      %1131 = vmatprep.mubr.bf16.mxu0 0
      %1132 = vmatmul.mubr.bf16.gmra.mxu0 %v546
      %v1133 = vpop.f32.mrf.mxu0
      %v1134 = vadd.f32 0.0, %v1133
      %v1135 = vpop.f32.mrf.mxu0
      %v1136 = vpop.f32.mrf.mxu0
      %v1137 = vadd.f32 0.0, %v1136
      %v1138 = vpop.f32.mrf.mxu0
      %1139 = vmatprep.mubr.bf16.mxu0 0
      %1140 = vmatmul.mubr.bf16.gmra.mxu0 %v547
      %v1141 = vpop.f32.mrf.mxu0
      %v1142 = vadd.f32 0.0, %v1141
      %v1143 = vpop.f32.mrf.mxu0
      %v1144 = vpop.f32.mrf.mxu0
      %v1145 = vadd.f32 0.0, %v1144
      %v1146 = vpop.f32.mrf.mxu0
      %1147 = vmatprep.mubr.bf16.mxu0 0
      %1148 = vmatmul.mubr.bf16.gmra.mxu0 %v548
      %v1149 = vpop.f32.mrf.mxu0
      %v1150 = vadd.f32 0.0, %v1149
      %v1151 = vpop.f32.mrf.mxu0
      %v1152 = vpop.f32.mrf.mxu0
      %v1153 = vadd.f32 0.0, %v1152
      %v1154 = vpop.f32.mrf.mxu0
      %1155 = vmatprep.mubr.bf16.mxu0 0
      %1156 = vmatmul.mubr.bf16.gmra.mxu0 %v549
      %v1157 = vpop.f32.mrf.mxu0
      %v1158 = vadd.f32 0.0, %v1157
      %v1159 = vpop.f32.mrf.mxu0
      %v1160 = vpop.f32.mrf.mxu0
      %v1161 = vadd.f32 0.0, %v1160
      %v1162 = vpop.f32.mrf.mxu0
      %1163 = vmatprep.mubr.bf16.mxu0 0
      %1164 = vmatmul.mubr.bf16.gmra.mxu0 %v550
      %v1165 = vpop.f32.mrf.mxu0
      %v1166 = vadd.f32 0.0, %v1165
      %v1167 = vpop.f32.mrf.mxu0
      %v1168 = vpop.f32.mrf.mxu0
      %v1169 = vadd.f32 0.0, %v1168
      %v1170 = vpop.f32.mrf.mxu0
      %1171 = vmatprep.mubr.bf16.mxu0 0
      %1172 = vmatmul.mubr.bf16.gmra.mxu0 %v551
      %v1173 = vpop.f32.mrf.mxu0
      %v1174 = vadd.f32 0.0, %v1173
      %v1175 = vpop.f32.mrf.mxu0
      %v1176 = vpop.f32.mrf.mxu0
      %v1177 = vadd.f32 0.0, %v1176
      %v1178 = vpop.f32.mrf.mxu0
      %1179 = vmatprep.mubr.bf16.mxu0 0
      %1180 = vmatmul.mubr.bf16.gmra.mxu0 %v552
      %v1181 = vpop.f32.mrf.mxu0
      %v1182 = vadd.f32 0.0, %v1181
      %v1183 = vpop.f32.mrf.mxu0
      %v1184 = vpop.f32.mrf.mxu0
      %v1185 = vadd.f32 0.0, %v1184
      %v1186 = vpop.f32.mrf.mxu0
      %1187 = vmatprep.mubr.bf16.mxu0 0
      %1188 = vmatmul.mubr.bf16.gmra.mxu0 %v553
      %v1189 = vpop.f32.mrf.mxu0
      %v1190 = vadd.f32 0.0, %v1189
      %v1191 = vpop.f32.mrf.mxu0
      %v1192 = vpop.f32.mrf.mxu0
      %v1193 = vadd.f32 0.0, %v1192
      %v1194 = vpop.f32.mrf.mxu0
      %1195 = vdwg.mxu0
      %v1196 = vpack.c.bf16 %v1137, %v1134
      %v1197 = vpack.c.bf16 %v1145, %v1142
      %v1198 = vpack.c.bf16 %v1153, %v1150
      %v1199 = vpack.c.bf16 %v1161, %v1158
      %v1200 = vpack.c.bf16 %v1169, %v1166
      %v1201 = vpack.c.bf16 %v1177, %v1174
      %v1202 = vpack.c.bf16 %v1185, %v1182
      %v1203 = vpack.c.bf16 %v1193, %v1190
      %v1204 = vld [vmem:[%s7] sm:$0xf]
      %v1205 = vld [vmem:[%s7 + $0x4] sm:$0xf]
      %v1206 = vld [vmem:[%s7 + $0x8] sm:$0xf]
      %v1207 = vld [vmem:[%s7 + $0xc] sm:$0xf]
      %v1208 = vld [vmem:[%s7 + $0x10] sm:$0xf]
      %v1209 = vld [vmem:[%s7 + $0x14] sm:$0xf]
      %v1210 = vld [vmem:[%s7 + $0x18] sm:$0xf]
      %v1211 = vld [vmem:[%s7 + $0x1c] sm:$0xf]
      %v1212 = vld [vmem:[%s7 + $0x20] sm:$0xf]
      %v1213 = vld [vmem:[%s7 + $0x24] sm:$0xf]
      %v1214 = vld [vmem:[%s7 + $0x28] sm:$0xf]
      %v1215 = vld [vmem:[%s7 + $0x2c] sm:$0xf]
      %v1216 = vld [vmem:[%s7 + $0x30] sm:$0xf]
      %v1217 = vld [vmem:[%s7 + $0x34] sm:$0xf]
      %v1218 = vld [vmem:[%s7 + $0x38] sm:$0xf]
      %v1219 = vld [vmem:[%s7 + $0x3c] sm:$0xf]
      %v1220 = vld [vmem:[%s8] sm:$0x1]
      %v1222 = vlaneseq
      %v1223 = vshrl.u32 %v1222, 7
      %v1224 = vsub.s32 0, %v1223
      %v1225 = vrot.slane %v1220, %v1224
      %v1243 = vunpack.c.l.b16 %v1204
      %v1244 = vunpack.c.l.b16 %v1205
      %v1245 = vunpack.c.l.b16 %v1206
      %v1246 = vunpack.c.l.b16 %v1207
      %v1247 = vunpack.c.l.b16 %v1208
      %v1248 = vunpack.c.l.b16 %v1209
      %v1249 = vunpack.c.l.b16 %v1210
      %v1250 = vunpack.c.l.b16 %v1211
      %v1251 = vunpack.c.l.b16 %v1212
      %v1252 = vunpack.c.l.b16 %v1213
      %v1253 = vunpack.c.l.b16 %v1214
      %v1254 = vunpack.c.l.b16 %v1215
      %v1255 = vunpack.c.l.b16 %v1216
      %v1256 = vunpack.c.l.b16 %v1217
      %v1257 = vunpack.c.l.b16 %v1218
      %v1258 = vunpack.c.l.b16 %v1219
      %v1259 = vpack.c.b16 %v1244, %v1243
      %v1260 = vpack.c.b16 %v1246, %v1245
      %v1261 = vpack.c.b16 %v1248, %v1247
      %v1262 = vpack.c.b16 %v1250, %v1249
      %v1263 = vpack.c.b16 %v1252, %v1251
      %v1264 = vpack.c.b16 %v1254, %v1253
      %v1265 = vpack.c.b16 %v1256, %v1255
      %v1266 = vpack.c.b16 %v1258, %v1257
      %1275 = vmatprep.subr.bf16.mxu0 0
      %1276 = vmatpush1.bf16.msra.mxu0 %v1266
      %1277 = vmatprep.subr.bf16.mxu0 0
      %1278 = vmatpush1.bf16.msra.mxu0 %v1265
      %1279 = vmatprep.subr.bf16.mxu0 0
      %1280 = vmatpush1.bf16.msra.mxu0 %v1264
      %1281 = vmatprep.subr.bf16.mxu0 0
      %1282 = vmatpush1.bf16.msra.mxu0 %v1263
      %1283 = vmatprep.subr.bf16.mxu0 0
      %1284 = vmatpush1.bf16.msra.mxu0 %v1262
      %1285 = vmatprep.subr.bf16.mxu0 0
      %1286 = vmatpush1.bf16.msra.mxu0 %v1261
      %1287 = vmatprep.subr.bf16.mxu0 0
      %1288 = vmatpush1.bf16.msra.mxu0 %v1260
      %1289 = vmatprep.subr.bf16.mxu0 0
      %1290 = vmatpush1.bf16.msra.mxu0 %v1259
      %1291 = vmatprep.subr.bf16.mxu0 0
      %1292 = vmatpush2.bf16.msra.mxu0 0
      %1293 = vmatprep.subr.bf16.mxu0 0
      %1294 = vmatpush2.bf16.msra.mxu0 0
      %1295 = vmatprep.subr.bf16.mxu0 0
      %1296 = vmatpush2.bf16.msra.mxu0 0
      %1297 = vmatprep.subr.bf16.mxu0 0
      %1298 = vmatpush2.bf16.msra.mxu0 0
      %1299 = vmatprep.subr.bf16.mxu0 0
      %1300 = vmatpush2.bf16.msra.mxu0 0
      %1301 = vmatprep.subr.bf16.mxu0 0
      %1302 = vmatpush2.bf16.msra.mxu0 0
      %1303 = vmatprep.subr.bf16.mxu0 0
      %1304 = vmatpush2.bf16.msra.mxu0 0
      %1305 = vmatprep.subr.bf16.mxu0 0
      %1306 = vmatpush2.bf16.msra.mxu0 0
      %1307 = vmatprep.mubr.bf16.mxu0 0
      %1308 = vmatmul.mubr.bf16.gmra.mxu0 %v1196
      %v1309 = vpop.f32.mrf.mxu0
      %v1310 = vadd.f32 %v1225, %v1309
      %v1311 = vpop.f32.mrf.mxu0
      %v1312 = vpop.f32.mrf.mxu0
      %v1313 = vadd.f32 %v1225, %v1312
      %v1314 = vpop.f32.mrf.mxu0
      %1315 = vmatprep.mubr.bf16.mxu0 0
      %1316 = vmatmul.mubr.bf16.gmra.mxu0 %v1197
      %v1317 = vpop.f32.mrf.mxu0
      %v1318 = vadd.f32 %v1225, %v1317
      %v1319 = vpop.f32.mrf.mxu0
      %v1320 = vpop.f32.mrf.mxu0
      %v1321 = vadd.f32 %v1225, %v1320
      %v1322 = vpop.f32.mrf.mxu0
      %1323 = vmatprep.mubr.bf16.mxu0 0
      %1324 = vmatmul.mubr.bf16.gmra.mxu0 %v1198
      %v1325 = vpop.f32.mrf.mxu0
      %v1326 = vadd.f32 %v1225, %v1325
      %v1327 = vpop.f32.mrf.mxu0
      %v1328 = vpop.f32.mrf.mxu0
      %v1329 = vadd.f32 %v1225, %v1328
      %v1330 = vpop.f32.mrf.mxu0
      %1331 = vmatprep.mubr.bf16.mxu0 0
      %1332 = vmatmul.mubr.bf16.gmra.mxu0 %v1199
      %v1333 = vpop.f32.mrf.mxu0
      %v1334 = vadd.f32 %v1225, %v1333
      %v1335 = vpop.f32.mrf.mxu0
      %v1336 = vpop.f32.mrf.mxu0
      %v1337 = vadd.f32 %v1225, %v1336
      %v1338 = vpop.f32.mrf.mxu0
      %1339 = vmatprep.mubr.bf16.mxu0 0
      %1340 = vmatmul.mubr.bf16.gmra.mxu0 %v1200
      %v1341 = vpop.f32.mrf.mxu0
      %v1342 = vadd.f32 %v1225, %v1341
      %v1343 = vpop.f32.mrf.mxu0
      %v1344 = vpop.f32.mrf.mxu0
      %v1345 = vadd.f32 %v1225, %v1344
      %v1346 = vpop.f32.mrf.mxu0
      %1347 = vmatprep.mubr.bf16.mxu0 0
      %1348 = vmatmul.mubr.bf16.gmra.mxu0 %v1201
      %v1349 = vpop.f32.mrf.mxu0
      %v1350 = vadd.f32 %v1225, %v1349
      %v1351 = vpop.f32.mrf.mxu0
      %v1352 = vpop.f32.mrf.mxu0
      %v1353 = vadd.f32 %v1225, %v1352
      %v1354 = vpop.f32.mrf.mxu0
      %1355 = vmatprep.mubr.bf16.mxu0 0
      %1356 = vmatmul.mubr.bf16.gmra.mxu0 %v1202
      %v1357 = vpop.f32.mrf.mxu0
      %v1358 = vadd.f32 %v1225, %v1357
      %v1359 = vpop.f32.mrf.mxu0
      %v1360 = vpop.f32.mrf.mxu0
      %v1361 = vadd.f32 %v1225, %v1360
      %v1362 = vpop.f32.mrf.mxu0
      %1363 = vmatprep.mubr.bf16.mxu0 0
      %1364 = vmatmul.mubr.bf16.gmra.mxu0 %v1203
      %v1365 = vpop.f32.mrf.mxu0
      %v1366 = vadd.f32 %v1225, %v1365
      %v1367 = vpop.f32.mrf.mxu0
      %v1368 = vpop.f32.mrf.mxu0
      %v1369 = vadd.f32 %v1225, %v1368
      %v1370 = vpop.f32.mrf.mxu0
      %1371 = vdwg.mxu0
      %v1372 = vmax.f32 %v1310, 0.0
      %v1373 = vmax.f32 %v1313, 0.0
      %v1374 = vmax.f32 %v1318, 0.0
      %v1375 = vmax.f32 %v1321, 0.0
      %v1376 = vmax.f32 %v1326, 0.0
      %v1377 = vmax.f32 %v1329, 0.0
      %v1378 = vmax.f32 %v1334, 0.0
      %v1379 = vmax.f32 %v1337, 0.0
      %v1380 = vmax.f32 %v1342, 0.0
      %v1381 = vmax.f32 %v1345, 0.0
      %v1382 = vmax.f32 %v1350, 0.0
      %v1383 = vmax.f32 %v1353, 0.0
      %v1384 = vmax.f32 %v1358, 0.0
      %v1385 = vmax.f32 %v1361, 0.0
      %v1386 = vmax.f32 %v1366, 0.0
      %v1387 = vmax.f32 %v1369, 0.0
      %v1388 = vpack.c.bf16 %v1373, %v1372
      %v1389 = vpack.c.bf16 %v1375, %v1374
      %v1390 = vpack.c.bf16 %v1377, %v1376
      %v1391 = vpack.c.bf16 %v1379, %v1378
      %v1392 = vpack.c.bf16 %v1381, %v1380
      %v1393 = vpack.c.bf16 %v1383, %v1382
      %v1394 = vpack.c.bf16 %v1385, %v1384
      %v1395 = vpack.c.bf16 %v1387, %v1386
      %v1396 = vld [vmem:[%s9] sm:$0xf]
      %v1397 = vld [vmem:[%s9 + $0x4] sm:$0xf]
      %v1398 = vld [vmem:[%s9 + $0x8] sm:$0xf]
      %v1399 = vld [vmem:[%s9 + $0xc] sm:$0xf]
      %v1400 = vld [vmem:[%s9 + $0x10] sm:$0xf]
      %v1401 = vld [vmem:[%s9 + $0x14] sm:$0xf]
      %v1402 = vld [vmem:[%s9 + $0x18] sm:$0xf]
      %v1403 = vld [vmem:[%s9 + $0x1c] sm:$0xf]
      %v1404 = vld [vmem:[%s9 + $0x20] sm:$0xf]
      %v1405 = vld [vmem:[%s9 + $0x24] sm:$0xf]
      %v1406 = vld [vmem:[%s9 + $0x28] sm:$0xf]
      %v1407 = vld [vmem:[%s9 + $0x2c] sm:$0xf]
      %v1408 = vld [vmem:[%s9 + $0x30] sm:$0xf]
      %v1409 = vld [vmem:[%s9 + $0x34] sm:$0xf]
      %v1410 = vld [vmem:[%s9 + $0x38] sm:$0xf]
      %v1411 = vld [vmem:[%s9 + $0x3c] sm:$0xf]
      %v1412 = vld [vmem:[%s10] sm:$0x1]
      %v1414 = vlaneseq
      %v1415 = vshrl.u32 %v1414, 7
      %v1416 = vsub.s32 0, %v1415
      %v1417 = vrot.slane %v1412, %v1416
      %v1435 = vunpack.c.l.b16 %v1396
      %v1436 = vunpack.c.l.b16 %v1397
      %v1437 = vunpack.c.l.b16 %v1398
      %v1438 = vunpack.c.l.b16 %v1399
      %v1439 = vunpack.c.l.b16 %v1400
      %v1440 = vunpack.c.l.b16 %v1401
      %v1441 = vunpack.c.l.b16 %v1402
      %v1442 = vunpack.c.l.b16 %v1403
      %v1443 = vunpack.c.l.b16 %v1404
      %v1444 = vunpack.c.l.b16 %v1405
      %v1445 = vunpack.c.l.b16 %v1406
      %v1446 = vunpack.c.l.b16 %v1407
      %v1447 = vunpack.c.l.b16 %v1408
      %v1448 = vunpack.c.l.b16 %v1409
      %v1449 = vunpack.c.l.b16 %v1410
      %v1450 = vunpack.c.l.b16 %v1411
      %v1451 = vpack.c.b16 %v1436, %v1435
      %v1452 = vpack.c.b16 %v1438, %v1437
      %v1453 = vpack.c.b16 %v1440, %v1439
      %v1454 = vpack.c.b16 %v1442, %v1441
      %v1455 = vpack.c.b16 %v1444, %v1443
      %v1456 = vpack.c.b16 %v1446, %v1445
      %v1457 = vpack.c.b16 %v1448, %v1447
      %v1458 = vpack.c.b16 %v1450, %v1449
      %1467 = vmatprep.subr.bf16.mxu0 0
      %1468 = vmatpush1.bf16.msra.mxu0 %v1458
      %1469 = vmatprep.subr.bf16.mxu0 0
      %1470 = vmatpush1.bf16.msra.mxu0 %v1457
      %1471 = vmatprep.subr.bf16.mxu0 0
      %1472 = vmatpush1.bf16.msra.mxu0 %v1456
      %1473 = vmatprep.subr.bf16.mxu0 0
      %1474 = vmatpush1.bf16.msra.mxu0 %v1455
      %1475 = vmatprep.subr.bf16.mxu0 0
      %1476 = vmatpush1.bf16.msra.mxu0 %v1454
      %1477 = vmatprep.subr.bf16.mxu0 0
      %1478 = vmatpush1.bf16.msra.mxu0 %v1453
      %1479 = vmatprep.subr.bf16.mxu0 0
      %1480 = vmatpush1.bf16.msra.mxu0 %v1452
      %1481 = vmatprep.subr.bf16.mxu0 0
      %1482 = vmatpush1.bf16.msra.mxu0 %v1451
      %1483 = vmatprep.subr.bf16.mxu0 0
      %1484 = vmatpush2.bf16.msra.mxu0 0
      %1485 = vmatprep.subr.bf16.mxu0 0
      %1486 = vmatpush2.bf16.msra.mxu0 0
      %1487 = vmatprep.subr.bf16.mxu0 0
      %1488 = vmatpush2.bf16.msra.mxu0 0
      %1489 = vmatprep.subr.bf16.mxu0 0
      %1490 = vmatpush2.bf16.msra.mxu0 0
      %1491 = vmatprep.subr.bf16.mxu0 0
      %1492 = vmatpush2.bf16.msra.mxu0 0
      %1493 = vmatprep.subr.bf16.mxu0 0
      %1494 = vmatpush2.bf16.msra.mxu0 0
      %1495 = vmatprep.subr.bf16.mxu0 0
      %1496 = vmatpush2.bf16.msra.mxu0 0
      %1497 = vmatprep.subr.bf16.mxu0 0
      %1498 = vmatpush2.bf16.msra.mxu0 0
      %1499 = vmatprep.mubr.bf16.mxu0 0
      %1500 = vmatmul.mubr.bf16.gmra.mxu0 %v1388
      %v1501 = vpop.f32.mrf.mxu0
      %v1502 = vadd.f32 %v1417, %v1501
      %v1503 = vpop.f32.mrf.mxu0
      %v1504 = vpop.f32.mrf.mxu0
      %v1505 = vadd.f32 %v1417, %v1504
      %v1506 = vpop.f32.mrf.mxu0
      %1507 = vmatprep.mubr.bf16.mxu0 0
      %1508 = vmatmul.mubr.bf16.gmra.mxu0 %v1389
      %v1509 = vpop.f32.mrf.mxu0
      %v1510 = vadd.f32 %v1417, %v1509
      %v1511 = vpop.f32.mrf.mxu0
      %v1512 = vpop.f32.mrf.mxu0
      %v1513 = vadd.f32 %v1417, %v1512
      %v1514 = vpop.f32.mrf.mxu0
      %1515 = vmatprep.mubr.bf16.mxu0 0
      %1516 = vmatmul.mubr.bf16.gmra.mxu0 %v1390
      %v1517 = vpop.f32.mrf.mxu0
      %v1518 = vadd.f32 %v1417, %v1517
      %v1519 = vpop.f32.mrf.mxu0
      %v1520 = vpop.f32.mrf.mxu0
      %v1521 = vadd.f32 %v1417, %v1520
      %v1522 = vpop.f32.mrf.mxu0
      %1523 = vmatprep.mubr.bf16.mxu0 0
      %1524 = vmatmul.mubr.bf16.gmra.mxu0 %v1391
      %v1525 = vpop.f32.mrf.mxu0
      %v1526 = vadd.f32 %v1417, %v1525
      %v1527 = vpop.f32.mrf.mxu0
      %v1528 = vpop.f32.mrf.mxu0
      %v1529 = vadd.f32 %v1417, %v1528
      %v1530 = vpop.f32.mrf.mxu0
      %1531 = vmatprep.mubr.bf16.mxu0 0
      %1532 = vmatmul.mubr.bf16.gmra.mxu0 %v1392
      %v1533 = vpop.f32.mrf.mxu0
      %v1534 = vadd.f32 %v1417, %v1533
      %v1535 = vpop.f32.mrf.mxu0
      %v1536 = vpop.f32.mrf.mxu0
      %v1537 = vadd.f32 %v1417, %v1536
      %v1538 = vpop.f32.mrf.mxu0
      %1539 = vmatprep.mubr.bf16.mxu0 0
      %1540 = vmatmul.mubr.bf16.gmra.mxu0 %v1393
      %v1541 = vpop.f32.mrf.mxu0
      %v1542 = vadd.f32 %v1417, %v1541
      %v1543 = vpop.f32.mrf.mxu0
      %v1544 = vpop.f32.mrf.mxu0
      %v1545 = vadd.f32 %v1417, %v1544
      %v1546 = vpop.f32.mrf.mxu0
      %1547 = vmatprep.mubr.bf16.mxu0 0
      %1548 = vmatmul.mubr.bf16.gmra.mxu0 %v1394
      %v1549 = vpop.f32.mrf.mxu0
      %v1550 = vadd.f32 %v1417, %v1549
      %v1551 = vpop.f32.mrf.mxu0
      %v1552 = vpop.f32.mrf.mxu0
      %v1553 = vadd.f32 %v1417, %v1552
      %v1554 = vpop.f32.mrf.mxu0
      %1555 = vmatprep.mubr.bf16.mxu0 0
      %1556 = vmatmul.mubr.bf16.gmra.mxu0 %v1395
      %v1557 = vpop.f32.mrf.mxu0
      %v1558 = vadd.f32 %v1417, %v1557
      %v1559 = vpop.f32.mrf.mxu0
      %v1560 = vpop.f32.mrf.mxu0
      %v1561 = vadd.f32 %v1417, %v1560
      %v1562 = vpop.f32.mrf.mxu0
      %1563 = vdwg.mxu0
      %v1564 = vmax.f32 %v1502, 0.0
      %v1565 = vmax.f32 %v1505, 0.0
      %v1566 = vmax.f32 %v1510, 0.0
      %v1567 = vmax.f32 %v1513, 0.0
      %v1568 = vmax.f32 %v1518, 0.0
      %v1569 = vmax.f32 %v1521, 0.0
      %v1570 = vmax.f32 %v1526, 0.0
      %v1571 = vmax.f32 %v1529, 0.0
      %v1572 = vmax.f32 %v1534, 0.0
      %v1573 = vmax.f32 %v1537, 0.0
      %v1574 = vmax.f32 %v1542, 0.0
      %v1575 = vmax.f32 %v1545, 0.0
      %v1576 = vmax.f32 %v1550, 0.0
      %v1577 = vmax.f32 %v1553, 0.0
      %v1578 = vmax.f32 %v1558, 0.0
      %v1579 = vmax.f32 %v1561, 0.0
      %v1580 = vld [vmem:[%s475] sm:$0xf]
      %v1581 = vld [vmem:[%s475 + $0x4] sm:$0xf]
      %v1582 = vld [vmem:[%s475 + $0x8] sm:$0xf]
      %v1583 = vld [vmem:[%s475 + $0xc] sm:$0xf]
      %v1584 = vld [vmem:[%s475 + $0x10] sm:$0xf]
      %v1585 = vld [vmem:[%s475 + $0x14] sm:$0xf]
      %v1586 = vld [vmem:[%s475 + $0x18] sm:$0xf]
      %v1587 = vld [vmem:[%s475 + $0x1c] sm:$0xf]
      %v1588 = vpack.c.bf16 %v1565, %v1564
      %v1589 = vpack.c.bf16 %v1567, %v1566
      %v1590 = vpack.c.bf16 %v1569, %v1568
      %v1591 = vpack.c.bf16 %v1571, %v1570
      %v1592 = vpack.c.bf16 %v1573, %v1572
      %v1593 = vpack.c.bf16 %v1575, %v1574
      %v1594 = vpack.c.bf16 %v1577, %v1576
      %v1595 = vpack.c.bf16 %v1579, %v1578
      %v1604 = vunpack.c.l.b16 %v1580
      %v1605 = vunpack.c.l.b16 %v1581
      %v1606 = vunpack.c.l.b16 %v1582
      %v1607 = vunpack.c.l.b16 %v1583
      %v1608 = vunpack.c.l.b16 %v1584
      %v1609 = vunpack.c.l.b16 %v1585
      %v1610 = vunpack.c.l.b16 %v1586
      %v1611 = vunpack.c.l.b16 %v1587
      %v1612 = vpack.c.b16 %v1605, %v1604
      %v1613 = vpack.c.b16 %v1607, %v1606
      %v1614 = vpack.c.b16 %v1609, %v1608
      %v1615 = vpack.c.b16 %v1611, %v1610
      %1620 = vmatprep.subr.bf16.mxu0 0
      %1621 = vmatpush1.bf16.msra.mxu0 %v1595
      %1622 = vmatprep.subr.bf16.mxu0 0
      %1623 = vmatpush1.bf16.msra.mxu0 %v1594
      %1624 = vmatprep.subr.bf16.mxu0 0
      %1625 = vmatpush1.bf16.msra.mxu0 %v1593
      %1626 = vmatprep.subr.bf16.mxu0 0
      %1627 = vmatpush1.bf16.msra.mxu0 %v1592
      %1628 = vmatprep.subr.bf16.mxu0 0
      %1629 = vmatpush1.bf16.msra.mxu0 %v1591
      %1630 = vmatprep.subr.bf16.mxu0 0
      %1631 = vmatpush1.bf16.msra.mxu0 %v1590
      %1632 = vmatprep.subr.bf16.mxu0 0
      %1633 = vmatpush1.bf16.msra.mxu0 %v1589
      %1634 = vmatprep.subr.bf16.mxu0 0
      %1635 = vmatpush1.bf16.msra.mxu0 %v1588
      %1636 = vmatprep.subr.bf16.mxu0 0
      %1637 = vmatpush2.bf16.msra.mxu0 0
      %1638 = vmatprep.subr.bf16.mxu0 0
      %1639 = vmatpush2.bf16.msra.mxu0 0
      %1640 = vmatprep.subr.bf16.mxu0 0
      %1641 = vmatpush2.bf16.msra.mxu0 0
      %1642 = vmatprep.subr.bf16.mxu0 0
      %1643 = vmatpush2.bf16.msra.mxu0 0
      %1644 = vmatprep.subr.bf16.mxu0 0
      %1645 = vmatpush2.bf16.msra.mxu0 0
      %1646 = vmatprep.subr.bf16.mxu0 0
      %1647 = vmatpush2.bf16.msra.mxu0 0
      %1648 = vmatprep.subr.bf16.mxu0 0
      %1649 = vmatpush2.bf16.msra.mxu0 0
      %1650 = vmatprep.subr.bf16.mxu0 0
      %1651 = vmatpush2.bf16.msra.mxu0 0
      %1652 = vmatprep.mubr.bf16.mxu0 0
      %1653 = vmatmul.mubr.bf16.gmra.mxu0 %v1612
      %v1654 = vpop.f32.mrf.mxu0
      %v1655 = vadd.f32 0.0, %v1654
      %v1656 = vpop.f32.mrf.mxu0
      %v1657 = vpop.f32.mrf.mxu0
      %v1658 = vadd.f32 0.0, %v1657
      %v1659 = vpop.f32.mrf.mxu0
      %1660 = vmatprep.mubr.bf16.mxu0 0
      %1661 = vmatmul.mubr.bf16.gmra.mxu0 %v1613
      %v1662 = vpop.f32.mrf.mxu0
      %v1663 = vadd.f32 0.0, %v1662
      %v1664 = vpop.f32.mrf.mxu0
      %v1665 = vpop.f32.mrf.mxu0
      %v1666 = vadd.f32 0.0, %v1665
      %v1667 = vpop.f32.mrf.mxu0
      %1668 = vmatprep.mubr.bf16.mxu0 0
      %1669 = vmatmul.mubr.bf16.gmra.mxu0 %v1614
      %v1670 = vpop.f32.mrf.mxu0
      %v1671 = vadd.f32 0.0, %v1670
      %v1672 = vpop.f32.mrf.mxu0
      %v1673 = vpop.f32.mrf.mxu0
      %v1674 = vadd.f32 0.0, %v1673
      %v1675 = vpop.f32.mrf.mxu0
      %1676 = vmatprep.mubr.bf16.mxu0 0
      %1677 = vmatmul.mubr.bf16.gmra.mxu0 %v1615
      %v1678 = vpop.f32.mrf.mxu0
      %v1679 = vadd.f32 0.0, %v1678
      %v1680 = vpop.f32.mrf.mxu0
      %v1681 = vpop.f32.mrf.mxu0
      %v1682 = vadd.f32 0.0, %v1681
      %v1683 = vpop.f32.mrf.mxu0
      %1684 = vdwg.mxu0
      %v1685 = vpack.c.bf16 %v1658, %v1655
      %v1686 = vpack.c.bf16 %v1666, %v1663
      %v1687 = vpack.c.bf16 %v1674, %v1671
      %v1688 = vpack.c.bf16 %v1682, %v1679
      %v1689 = vld [vmem:[%s11] sm:$0xf]
      %v1690 = vld [vmem:[%s11 + $0x4] sm:$0xf]
      %v1691 = vld [vmem:[%s11 + $0x8] sm:$0xf]
      %v1692 = vld [vmem:[%s11 + $0xc] sm:$0xf]
      %v1693 = vld [vmem:[%s11 + $0x10] sm:$0xf]
      %v1694 = vld [vmem:[%s11 + $0x14] sm:$0xf]
      %v1695 = vld [vmem:[%s11 + $0x18] sm:$0xf]
      %v1696 = vld [vmem:[%s11 + $0x1c] sm:$0xf]
      %v1697 = vld [vmem:[%s11 + $0x20] sm:$0xf]
      %v1698 = vld [vmem:[%s11 + $0x24] sm:$0xf]
      %v1699 = vld [vmem:[%s11 + $0x28] sm:$0xf]
      %v1700 = vld [vmem:[%s11 + $0x2c] sm:$0xf]
      %v1701 = vld [vmem:[%s11 + $0x30] sm:$0xf]
      %v1702 = vld [vmem:[%s11 + $0x34] sm:$0xf]
      %v1703 = vld [vmem:[%s11 + $0x38] sm:$0xf]
      %v1704 = vld [vmem:[%s11 + $0x3c] sm:$0xf]
      %v1705 = vld [vmem:[%s12] sm:$0x1]
      %v1707 = vlaneseq
      %v1708 = vshrl.u32 %v1707, 7
      %v1709 = vsub.s32 0, %v1708
      %v1710 = vrot.slane %v1705, %v1709
      %v1728 = vunpack.c.l.b16 %v1689
      %v1729 = vunpack.c.l.b16 %v1690
      %v1730 = vunpack.c.l.b16 %v1691
      %v1731 = vunpack.c.l.b16 %v1692
      %v1732 = vunpack.c.l.b16 %v1693
      %v1733 = vunpack.c.l.b16 %v1694
      %v1734 = vunpack.c.l.b16 %v1695
      %v1735 = vunpack.c.l.b16 %v1696
      %v1736 = vunpack.c.l.b16 %v1697
      %v1737 = vunpack.c.l.b16 %v1698
      %v1738 = vunpack.c.l.b16 %v1699
      %v1739 = vunpack.c.l.b16 %v1700
      %v1740 = vunpack.c.l.b16 %v1701
      %v1741 = vunpack.c.l.b16 %v1702
      %v1742 = vunpack.c.l.b16 %v1703
      %v1743 = vunpack.c.l.b16 %v1704
      %v1744 = vpack.c.b16 %v1729, %v1728
      %v1745 = vpack.c.b16 %v1731, %v1730
      %v1746 = vpack.c.b16 %v1733, %v1732
      %v1747 = vpack.c.b16 %v1735, %v1734
      %v1748 = vpack.c.b16 %v1737, %v1736
      %v1749 = vpack.c.b16 %v1739, %v1738
      %v1750 = vpack.c.b16 %v1741, %v1740
      %v1751 = vpack.c.b16 %v1743, %v1742
      %1760 = vmatprep.subr.bf16.mxu0 0
      %1761 = vmatpush1.bf16.msra.mxu0 %v1751
      %1762 = vmatprep.subr.bf16.mxu0 0
      %1763 = vmatpush1.bf16.msra.mxu0 %v1750
      %1764 = vmatprep.subr.bf16.mxu0 0
      %1765 = vmatpush1.bf16.msra.mxu0 %v1749
      %1766 = vmatprep.subr.bf16.mxu0 0
      %1767 = vmatpush1.bf16.msra.mxu0 %v1748
      %1768 = vmatprep.subr.bf16.mxu0 0
      %1769 = vmatpush1.bf16.msra.mxu0 %v1747
      %1770 = vmatprep.subr.bf16.mxu0 0
      %1771 = vmatpush1.bf16.msra.mxu0 %v1746
      %1772 = vmatprep.subr.bf16.mxu0 0
      %1773 = vmatpush1.bf16.msra.mxu0 %v1745
      %1774 = vmatprep.subr.bf16.mxu0 0
      %1775 = vmatpush1.bf16.msra.mxu0 %v1744
      %1776 = vmatprep.subr.bf16.mxu0 0
      %1777 = vmatpush2.bf16.msra.mxu0 0
      %1778 = vmatprep.subr.bf16.mxu0 0
      %1779 = vmatpush2.bf16.msra.mxu0 0
      %1780 = vmatprep.subr.bf16.mxu0 0
      %1781 = vmatpush2.bf16.msra.mxu0 0
      %1782 = vmatprep.subr.bf16.mxu0 0
      %1783 = vmatpush2.bf16.msra.mxu0 0
      %1784 = vmatprep.subr.bf16.mxu0 0
      %1785 = vmatpush2.bf16.msra.mxu0 0
      %1786 = vmatprep.subr.bf16.mxu0 0
      %1787 = vmatpush2.bf16.msra.mxu0 0
      %1788 = vmatprep.subr.bf16.mxu0 0
      %1789 = vmatpush2.bf16.msra.mxu0 0
      %1790 = vmatprep.subr.bf16.mxu0 0
      %1791 = vmatpush2.bf16.msra.mxu0 0
      %1792 = vmatprep.mubr.bf16.mxu0 0
      %1793 = vmatmul.mubr.bf16.gmra.mxu0 %v1685
      %v1794 = vpop.f32.mrf.mxu0
      %v1795 = vadd.f32 %v1710, %v1794
      %v1796 = vpop.f32.mrf.mxu0
      %v1797 = vpop.f32.mrf.mxu0
      %v1798 = vadd.f32 %v1710, %v1797
      %v1799 = vpop.f32.mrf.mxu0
      %1800 = vmatprep.mubr.bf16.mxu0 0
      %1801 = vmatmul.mubr.bf16.gmra.mxu0 %v1686
      %v1802 = vpop.f32.mrf.mxu0
      %v1803 = vadd.f32 %v1710, %v1802
      %v1804 = vpop.f32.mrf.mxu0
      %v1805 = vpop.f32.mrf.mxu0
      %v1806 = vadd.f32 %v1710, %v1805
      %v1807 = vpop.f32.mrf.mxu0
      %1808 = vmatprep.mubr.bf16.mxu0 0
      %1809 = vmatmul.mubr.bf16.gmra.mxu0 %v1687
      %v1810 = vpop.f32.mrf.mxu0
      %v1811 = vadd.f32 %v1710, %v1810
      %v1812 = vpop.f32.mrf.mxu0
      %v1813 = vpop.f32.mrf.mxu0
      %v1814 = vadd.f32 %v1710, %v1813
      %v1815 = vpop.f32.mrf.mxu0
      %1816 = vmatprep.mubr.bf16.mxu0 0
      %1817 = vmatmul.mubr.bf16.gmra.mxu0 %v1688
      %v1818 = vpop.f32.mrf.mxu0
      %v1819 = vadd.f32 %v1710, %v1818
      %v1820 = vpop.f32.mrf.mxu0
      %v1821 = vpop.f32.mrf.mxu0
      %v1822 = vadd.f32 %v1710, %v1821
      %v1823 = vpop.f32.mrf.mxu0
      %1824 = vdwg.mxu0
      %1825 = vst [vmem:[%s480] sm:$0xff] %v1795
      %1826 = vst [vmem:[%s480 + $0x8] sm:$0xff] %v1798
      %1827 = vst [vmem:[%s480 + $0x10] sm:$0xff] %v1803
      %1828 = vst [vmem:[%s480 + $0x18] sm:$0xff] %v1806
      %1829 = vst [vmem:[%s480 + $0x20] sm:$0xff] %v1811
      %1830 = vst [vmem:[%s480 + $0x28] sm:$0xff] %v1814
      %1831 = vst [vmem:[%s480 + $0x30] sm:$0xff] %v1819
      %1832 = vst [vmem:[%s480 + $0x38] sm:$0xff] %v1822
      %p1833 = scmp.lt.s32.totalorder %s24, 1
      %s1834 = scalar_select %p1833, %s24, 1
      %s1835 = smul.addr %s1834, 8
      %s1836 = smul.addr %s1835, 8
      %s1837 = scalar_lea.vmem %s13, %s1836
      // Predicated region
      $region73: #{_encoder_forward_impl.1} parent=71 // pred_check
        %p1838 = pneg %p330
      $region74: #{_encoder_forward_impl.1} parent=71 // pred_check_branch
        %1840 = sbr.rel (%p1838) target = $region76
      $region75: #{_encoder_forward_impl.1} parent=71 // pred_region
        _
      $region76: #{_encoder_forward_impl.1} parent=71 // pred_fallthru
        _
    $region72: #{_encoder_forward_impl.1} parent=5 // pred_fallthru
      _
    %p1841 = scmp.le.s32.totalorder 2, %s19
    // Predicated region
    $region77: #{_encoder_forward_impl.1} parent=5 // pred_check
      %p1842 = pneg %p1841
    $region78: #{_encoder_forward_impl.1} parent=5 // pred_check_branch
      %1844 = sbr.rel (%p1842) target = $region80
    $region79: #{_encoder_forward_impl.1} parent=5 // pred_region
      %s1845 = ssub.s32 %s19, 2
      // Predicated region
      $region81: #{_encoder_forward_impl.1} parent=79 // pred_check
        %p1846 = pneg %p336
      $region82: #{_encoder_forward_impl.1} parent=79 // pred_check_branch
        %1848 = sbr.rel (%p1846) target = $region84
      $region83: #{_encoder_forward_impl.1} parent=79 // pred_region
        %p1849 = scmp.lt.s32.totalorder %s25, 1
        %s1850 = scalar_select %p1849, %s25, 1
        %s1851 = smul.addr %s1850, 8
        %s1852 = smul.addr %s1851, 8
        %s1853 = scalar_lea.vmem %s13, %s1852
      $region84: #{_encoder_forward_impl.1} parent=79 // pred_fallthru
        _
    $region80: #{_encoder_forward_impl.1} parent=5 // pred_fallthru
      _
  $region6: #{_encoder_forward_impl.1} parent=0 // loop_footer
    %s23 = sadd.s32 1, %s19
  $region7: #{_encoder_forward_impl.1} parent=0 // loop_footer_branch
    %18 = sbr.rel target = $region3
  $region8: #{_encoder_forward_impl.1} parent=0 // loop_exit
    _

</llo_original>
